<compile_context>
chip_gen: v7x
topology: tpu7x:2x2x1
jax: 0.10.0
libtpu: 0.0.40
codegen_flags: <defaults>
</compile_context>

<pallas_src>
import jax
import jax.numpy as jnp
from jax.experimental import pallas as pl
from jax.experimental.pallas import tpu as pltpu

# ----------------------------- config (cfg.*) -------------------------------
NUM_ACTIONS = 4          # len(cfg.game_actions)
ACTION_EMBED_SIZE = 8    # cfg.action_embed_size
VAE_Z_SIZE = 32          # cfg.vae_z_size
RNN_SIZE = 32            # cfg.rnn_size
NUM_MIXTURES = 5         # cfg.num_mixtures
OUT_DIM = VAE_Z_SIZE * 3 * NUM_MIXTURES + 1    # 481
OUT_PAD = pl.cdiv(OUT_DIM, 128) * 128          # 512 (lane-dense head store)
INP_DIM = VAE_Z_SIZE + ACTION_EMBED_SIZE       # 40
SUBLANE = 8


# --------------------------- fused LSTM + head kernel ------------------------
def _mdnrnn_fused_kernel(inp_ref, keep_ref, wih_ref, whh_ref, blstm_ref,
                         wout_ref, bout_ref, out_ref):
    """One batch tile: LSTMCell unroll + streamed MDN head.

    inp_ref   : (T, TB, D)       bf16 time-major inputs (z ++ action-embedding)
    keep_ref  : (T, TB, H)       f32 (1 - done), pre-broadcast over H
    wih_ref   : (D, 4H)          bf16 input->gates weight (pre-transposed)
    whh_ref   : (H, 4H)          bf16 hidden->gates weight (pre-transposed)
    blstm_ref : (1, 4H)          f32 b_ih + b_hh
    wout_ref  : (H, OUT_PAD)     bf16 head weight, zero-padded to 512 lanes
    bout_ref  : (1, OUT_PAD)     f32 head bias, zero-padded
    out_ref   : (T-1, TB, OUT_PAD) f32 head output for steps 0..T-2
    """
    T, TB, D = inp_ref.shape
    H = whh_ref.shape[0]
    G = 4 * H

    # Hoisted input projection: one MXU pass over all timesteps of this tile.
    x_all = inp_ref[...].reshape(T * TB, D)                       # bf16
    gx = (jnp.dot(x_all, wih_ref[...], preferred_element_type=jnp.float32)
          + blstm_ref[...])                                       # (T*TB, 4H) f32
    gx = gx.reshape(T, TB, G)

    # Weight-stationary operands: loaded once, reused across the unroll.
    # TODO(synk): if the bundle dump shows the RHS being re-pushed per step,
    # drive the MXU explicitly with pltpu.matmul_push_rhs / matmul_acc_lhs.
    whh = whh_ref[...]                                            # (H, 4H) bf16
    wout = wout_ref[...]                                          # (H, 512) bf16
    bout = bout_ref[...]                                          # (1, 512) f32
    keep = keep_ref[...]                                          # (T, TB, H) f32

    # Recurrent state carried in vregs (no VMEM scratch round-trips).
    h = jnp.zeros((TB, H), jnp.float32)
    c = jnp.zeros((TB, H), jnp.float32)

    # TODO(synk): for very long T swap this static unroll for lax.fori_loop
    # (unroll=4..8) to bound code size / vreg live ranges.
    for t in range(T):
        gates = gx[t] + jnp.dot(h.astype(whh.dtype), whh,
                                preferred_element_type=jnp.float32)  # (TB, 4H)

        # Whole-vreg transcendentals (EUP slot), then static lane slices.
        sg = jax.nn.sigmoid(gates)
        tg = jnp.tanh(gates)
        i_g = sg[:, 0 * H:1 * H]
        f_g = sg[:, 1 * H:2 * H]
        g_g = tg[:, 2 * H:3 * H]
        o_g = sg[:, 3 * H:4 * H]

        c = f_g * c + i_g * g_g
        h_out = o_g * jnp.tanh(c)              # torch records hx BEFORE masking

        if t < T - 1:
            # Streamed head: (TB,H)@(H,512) on the MXU's slack, lane-dense store.
            head_t = (jnp.dot(h_out.astype(wout.dtype), wout,
                              preferred_element_type=jnp.float32) + bout)
            out_ref[t] = head_t.astype(out_ref.dtype)

        # Done-mask: precomputed & pre-broadcast, just an elementwise multiply.
        h = h_out * keep[t]
        c = c * keep[t]


def mdnrnn_fused(inp_tm, keep_tm, w_ih_t, w_hh_t, b_lstm2d, w_out_pad,
                 b_out_pad, *, batch_tile):
    """inp_tm: (T,Bp,D) bf16, keep_tm: (T,Bp,H) f32 -> head (T-1, Bp, OUT_PAD)."""
    T, Bp, D = inp_tm.shape
    H = w_hh_t.shape[0]
    G = 4 * H
    TB = batch_tile
    nb = Bp // TB

    # Explicit VMEM budget (double-buffered per-tile IO + weights + gx), with
    # headroom, capped below v7x's 64 MiB physical VMEM.
    per_tile_io = (T * TB * D * 2            # inp (bf16)
                   + T * TB * H * 4          # keep (f32)
                   + (T - 1) * TB * OUT_PAD * 4)   # out (f32)
    weights = D * G * 2 + H * G * 2 + G * 4 + H * OUT_PAD * 2 + OUT_PAD * 4
    est = 2 * per_tile_io + weights + T * TB * G * 4
    vmem_limit = int(min(max(4 * est, 16 * 1024 * 1024), 64 * 1024 * 1024))

    cost = pl.CostEstimate(
        flops=int(2 * (T * Bp * D * G + T * Bp * H * G
                       + (T - 1) * Bp * H * OUT_PAD)),
        transcendentals=int(T * Bp * (2 * G + H)),
        bytes_accessed=int(T * Bp * D * 2 + T * Bp * H * 4 + weights
                           + (T - 1) * Bp * OUT_PAD * 4),
    )

    return pl.pallas_call(
        _mdnrnn_fused_kernel,
        out_shape=jax.ShapeDtypeStruct((T - 1, Bp, OUT_PAD), jnp.float32),
        grid_spec=pltpu.PrefetchScalarGridSpec(
            num_scalar_prefetch=0,
            grid=(nb,),
            in_specs=[
                pl.BlockSpec((T, TB, D), lambda b: (0, b, 0)),
                pl.BlockSpec((T, TB, H), lambda b: (0, b, 0)),
                pl.BlockSpec((D, G), lambda b: (0, 0)),
                pl.BlockSpec((H, G), lambda b: (0, 0)),
                pl.BlockSpec((1, G), lambda b: (0, 0)),
                pl.BlockSpec((H, OUT_PAD), lambda b: (0, 0)),
                pl.BlockSpec((1, OUT_PAD), lambda b: (0, 0)),
            ],
            out_specs=pl.BlockSpec((T - 1, TB, OUT_PAD), lambda b: (0, b, 0)),
        ),
        compiler_params=pltpu.CompilerParams(
            dimension_semantics=("parallel",),
            vmem_limit_bytes=vmem_limit,
        ),
        cost_estimate=cost,
    )(inp_tm, keep_tm, w_ih_t, w_hh_t, b_lstm2d, w_out_pad, b_out_pad)


# ------------------------------ model forward --------------------------------
@jax.jit
def rnn_model_forward(params, z, actions, dones):
    """z: (B, T, Z) f32, actions: (B, T) int32, dones: (B, T) f32/bool."""
    B, T, Z = z.shape
    if T < 2:
        # TODO(synk): T == 1 (empty hs[:, :-1] head) is not supported, matching
        # the reference training setup which always has T >= 2.
        raise ValueError("rnn_model_forward requires T >= 2")

    act_emb = jnp.take(params["embed"], actions.astype(jnp.int32), axis=0)  # (B,T,E)
    inp = jnp.concatenate([z.astype(jnp.float32), act_emb], axis=2)          # (B,T,D)

    # Pad batch to a sublane multiple; batch tile gives >= full-vreg MXU rows
    # when the batch is there, and multiple tiles let v7x's 2 TCs split work.
    Bp0 = max(SUBLANE, pl.cdiv(B, SUBLANE) * SUBLANE)
    TB = Bp0 if Bp0 <= 128 else 128
    Bp = pl.cdiv(Bp0, TB) * TB

    inp_p = jnp.pad(inp, ((0, Bp - B), (0, 0), (0, 0)))
    keep = 1.0 - dones.astype(jnp.float32)                        # (B, T)
    keep_p = jnp.pad(keep, ((0, Bp - B), (0, 0)))

    # Time-major layout; matmul operands in bf16 (f32 accumulation in-kernel).
    inp_tm = jnp.transpose(inp_p, (1, 0, 2)).astype(jnp.bfloat16)  # (T, Bp, D)
    keep_tm = jnp.broadcast_to(
        jnp.transpose(keep_p, (1, 0))[:, :, None],
        (T, Bp, RNN_SIZE)).astype(jnp.float32)                     # (T, Bp, H)

    w_ih_bf = params["w_ih_t"].astype(jnp.bfloat16)
    w_hh_bf = params["w_hh_t"].astype(jnp.bfloat16)
    w_out_pad = jnp.pad(params["w_out_t"],
                        ((0, 0), (0, OUT_PAD - OUT_DIM))).astype(jnp.bfloat16)
    b_out_pad = jnp.pad(params["b_out"], (0, OUT_PAD - OUT_DIM)).reshape(1, OUT_PAD)
    b_lstm2d = params["b_lstm"].reshape(1, 4 * RNN_SIZE)

    head = mdnrnn_fused(inp_tm, keep_tm, w_ih_bf, w_hh_bf, b_lstm2d,
                        w_out_pad, b_out_pad, batch_tile=TB)       # (T-1,Bp,512)

    out = head[:, :B, :OUT_DIM]                                    # (T-1, B, OUT)
    out = jnp.transpose(out, (1, 0, 2))                            # (B, T-1, OUT)

    nm_z = NUM_MIXTURES * VAE_Z_SIZE
    logmix = out[..., 0 * nm_z:1 * nm_z].reshape(-1, NUM_MIXTURES)
    mu     = out[..., 1 * nm_z:2 * nm_z].reshape(-1, NUM_MIXTURES)
    logstd = out[..., 2 * nm_z:3 * nm_z].reshape(-1, NUM_MIXTURES)
    done_p = out[..., 3 * nm_z]                                    # (B, T-1)
    return logmix, mu, logstd, done_p


# ------------------------- pure-JAX reference (check) ------------------------
def reference_forward(params, z, actions, dones):
    B, T, Z = z.shape
    act_emb = jnp.take(params["embed"], actions.astype(jnp.int32), axis=0)
    inp = jnp.concatenate([z, act_emb], axis=2)
    dones_f = dones.astype(jnp.float32)

    def step(carry, xs):
        h, c = carry
        x_t, d_t = xs
        gates = x_t @ params["w_ih_t"] + h @ params["w_hh_t"] + params["b_lstm"]
        H = RNN_SIZE
        i_g = jax.nn.sigmoid(gates[:, :H])
        f_g = jax.nn.sigmoid(gates[:, H:2 * H])
        g_g = jnp.tanh(gates[:, 2 * H:3 * H])
        o_g = jax.nn.sigmoid(gates[:, 3 * H:])
        c_new = f_g * c + i_g * g_g
        h_new = o_g * jnp.tanh(c_new)
        mask = (1.0 - d_t)[:, None]
        return (h_new * mask, c_new * mask), h_new

    h0 = jnp.zeros((B, RNN_SIZE), jnp.float32)
    c0 = jnp.zeros((B, RNN_SIZE), jnp.float32)
    _, hs_tm = jax.lax.scan(step, (h0, c0),
                            (jnp.transpose(inp, (1, 0, 2)),
                             jnp.transpose(dones_f, (1, 0))))
    hs = jnp.transpose(hs_tm, (1, 0, 2))
    out = hs[:, :-1, :] @ params["w_out_t"] + params["b_out"]
    nm_z = NUM_MIXTURES * VAE_Z_SIZE
    return (out[..., :nm_z].reshape(-1, NUM_MIXTURES),
            out[..., nm_z:2 * nm_z].reshape(-1, NUM_MIXTURES),
            out[..., 2 * nm_z:3 * nm_z].reshape(-1, NUM_MIXTURES),
            out[..., 3 * nm_z])


# ------------------------------- param init ----------------------------------
def init_params(key):
    ks = jax.random.split(key, 6)
    k_lstm = 1.0 / jnp.sqrt(RNN_SIZE)
    k_out = 1.0 / jnp.sqrt(RNN_SIZE)
    return {
        "embed":   jax.random.normal(ks[0], (NUM_ACTIONS, ACTION_EMBED_SIZE),
                                     jnp.float32),
        # stored pre-transposed: (D, 4H), (H, 4H), gate order i,f,g,o
        "w_ih_t":  jax.random.uniform(ks[1], (INP_DIM, 4 * RNN_SIZE),
                                      jnp.float32, -k_lstm, k_lstm),
        "w_hh_t":  jax.random.uniform(ks[2], (RNN_SIZE, 4 * RNN_SIZE),
                                      jnp.float32, -k_lstm, k_lstm),
        "b_lstm":  jax.random.uniform(ks[3], (4 * RNN_SIZE,),
                                      jnp.float32, -k_lstm, k_lstm),
        # output Linear stored as (H, OUT_DIM)
        "w_out_t": jax.random.uniform(ks[4], (RNN_SIZE, OUT_DIM),
                                      jnp.float32, -k_out, k_out),
        "b_out":   jax.random.uniform(ks[5], (OUT_DIM,),
                                      jnp.float32, -k_out, k_out),
    }


# ---------------------------------- main --------------------------------------
if __name__ == "__main__":
    key = jax.random.PRNGKey(0)
    kp, kz, ka, kd = jax.random.split(key, 4)

    B, T = 2, 8
    params = init_params(kp)
    z = jax.random.normal(kz, (B, T, VAE_Z_SIZE), jnp.float32)
    actions = jax.random.randint(ka, (B, T), 0, NUM_ACTIONS, jnp.int32)
    dones = (jax.random.uniform(kd, (B, T)) < 0.2).astype(jnp.float32)

    outs = rnn_model_forward(params, z, actions, dones)
    jax.block_until_ready(outs)
    logmix, mu, logstd, done_p = outs

    # sanity shapes: (B*(T-1)*Z, num_mixtures) and (B, T-1)
    assert logmix.shape == (B * (T - 1) * VAE_Z_SIZE, NUM_MIXTURES)
    assert mu.shape == logmix.shape and logstd.shape == logmix.shape
    assert done_p.shape == (B, T - 1)

    # correctness vs pure-JAX f32 reference (kernel uses bf16 MXU operands with
    # f32 accumulation, hence the loose tolerance).
    ref = reference_forward(params, z, actions, dones)
    for got, want in zip((logmix, mu, logstd, done_p), ref):
        assert jnp.allclose(got, want, rtol=2e-2, atol=2e-2), "mismatch vs reference"

    print("KERNEL_OK")
</pallas_src>

<mosaic_0001>
module attributes {stable_mosaic.version = 11 : i64} {
  func.func @_mdnrnn_fused_kernel(%arg0: i32, %arg1: memref<8x8x40xbf16, #tpu.memory_space<vmem>>, %arg2: memref<8x8x32xf32, #tpu.memory_space<vmem>>, %arg3: memref<40x128xbf16, #tpu.memory_space<vmem>>, %arg4: memref<32x128xbf16, #tpu.memory_space<vmem>>, %arg5: memref<1x128xf32, #tpu.memory_space<vmem>>, %arg6: memref<32x512xbf16, #tpu.memory_space<vmem>>, %arg7: memref<1x512xf32, #tpu.memory_space<vmem>>, %arg8: memref<7x8x512xf32, #tpu.memory_space<vmem>>) attributes {dimension_semantics = [#tpu.dimension_semantics<parallel>], iteration_bounds = array<i64: 1>, scalar_prefetch = 0 : i64, scratch_operands = 0 : i64, tpu.core_type = #tpu.core_type<tc>, window_params = [{transform_indices = @transform_0, window_bounds = array<i64: 8, 8, 40>}, {transform_indices = @transform_1, window_bounds = array<i64: 8, 8, 32>}, {pipeline_mode = #tpu.pipeline_mode<synchronous>, transform_indices = @transform_2, window_bounds = array<i64: 40, 128>}, {pipeline_mode = #tpu.pipeline_mode<synchronous>, transform_indices = @transform_3, window_bounds = array<i64: 32, 128>}, {pipeline_mode = #tpu.pipeline_mode<synchronous>, transform_indices = @transform_4, window_bounds = array<i64: 1, 128>}, {pipeline_mode = #tpu.pipeline_mode<synchronous>, transform_indices = @transform_5, window_bounds = array<i64: 32, 512>}, {pipeline_mode = #tpu.pipeline_mode<synchronous>, transform_indices = @transform_6, window_bounds = array<i64: 1, 512>}, {transform_indices = @transform_7, window_bounds = array<i64: 7, 8, 512>}]} {
    %c0 = arith.constant 0 : index
    %c0_0 = arith.constant 0 : index
    %c0_1 = arith.constant 0 : index
    %0 = vector.load %arg1[%c0, %c0_0, %c0_1] : memref<8x8x40xbf16, #tpu.memory_space<vmem>>, vector<8x8x40xbf16>
    %1 = vector.shape_cast %0 : vector<8x8x40xbf16> to vector<64x40xbf16>
    %c0_2 = arith.constant 0 : index
    %c0_3 = arith.constant 0 : index
    %2 = vector.load %arg3[%c0_2, %c0_3] : memref<40x128xbf16, #tpu.memory_space<vmem>>, vector<40x128xbf16>
    %cst = arith.constant dense<0.000000e+00> : vector<64x128xf32>
    %3 = tpu.matmul %1, %2, %cst {dimension_numbers = #tpu.dot_dimension_numbers<[1], [0], [0], [1], [0, 0, 1, 1], [], []>} : vector<64x40xbf16>, vector<40x128xbf16>, vector<64x128xf32> -> vector<64x128xf32>
    %c0_4 = arith.constant 0 : index
    %c0_5 = arith.constant 0 : index
    %4 = vector.load %arg5[%c0_4, %c0_5] : memref<1x128xf32, #tpu.memory_space<vmem>>, vector<1x128xf32>
    %5 = vector.broadcast %4 : vector<1x128xf32> to vector<64x128xf32>
    %6 = arith.addf %3, %5 : vector<64x128xf32>
    %7 = vector.shape_cast %6 : vector<64x128xf32> to vector<8x8x128xf32>
    %c0_6 = arith.constant 0 : index
    %c0_7 = arith.constant 0 : index
    %8 = vector.load %arg4[%c0_6, %c0_7] : memref<32x128xbf16, #tpu.memory_space<vmem>>, vector<32x128xbf16>
    %c0_8 = arith.constant 0 : index
    %c0_9 = arith.constant 0 : index
    %9 = vector.load %arg6[%c0_8, %c0_9] : memref<32x512xbf16, #tpu.memory_space<vmem>>, vector<32x512xbf16>
    %c0_10 = arith.constant 0 : index
    %c0_11 = arith.constant 0 : index
    %10 = vector.load %arg7[%c0_10, %c0_11] : memref<1x512xf32, #tpu.memory_space<vmem>>, vector<1x512xf32>
    %c0_12 = arith.constant 0 : index
    %c0_13 = arith.constant 0 : index
    %c0_14 = arith.constant 0 : index
    %11 = vector.load %arg2[%c0_12, %c0_13, %c0_14] : memref<8x8x32xf32, #tpu.memory_space<vmem>>, vector<8x8x32xf32>
    %cst_15 = arith.constant 0.000000e+00 : f32
    %12 = vector.broadcast %cst_15 : f32 to vector<8x32xf32>
    %cst_16 = arith.constant 0.000000e+00 : f32
    %13 = vector.broadcast %cst_16 : f32 to vector<8x32xf32>
    %14 = vector.extract_strided_slice %7 {offsets = [0, 0, 0], sizes = [1, 8, 128], strides = [1, 1, 1]} : vector<8x8x128xf32> to vector<1x8x128xf32>
    %15 = vector.shape_cast %14 : vector<1x8x128xf32> to vector<8x128xf32>
    %16 = arith.truncf %12 : vector<8x32xf32> to vector<8x32xbf16>
    %cst_17 = arith.constant dense<0.000000e+00> : vector<8x128xf32>
    %17 = tpu.matmul %16, %8, %cst_17 {dimension_numbers = #tpu.dot_dimension_numbers<[1], [0], [0], [1], [0, 0, 1, 1], [], []>} : vector<8x32xbf16>, vector<32x128xbf16>, vector<8x128xf32> -> vector<8x128xf32>
    %18 = arith.addf %15, %17 : vector<8x128xf32>
    %19 = arith.negf %18 : vector<8x128xf32>
    %20 = math.exp %19 : vector<8x128xf32>
    %cst_18 = arith.constant 1.000000e+00 : f32
    %21 = vector.broadcast %cst_18 : f32 to vector<8x128xf32>
    %22 = arith.addf %21, %20 : vector<8x128xf32>
    %23 = arith.divf %21, %22 : vector<8x128xf32>
    %24 = math.tanh %18 : vector<8x128xf32>
    %25 = vector.extract_strided_slice %23 {offsets = [0, 0], sizes = [8, 32], strides = [1, 1]} : vector<8x128xf32> to vector<8x32xf32>
    %26 = vector.extract_strided_slice %23 {offsets = [0, 32], sizes = [8, 32], strides = [1, 1]} : vector<8x128xf32> to vector<8x32xf32>
    %27 = vector.extract_strided_slice %24 {offsets = [0, 64], sizes = [8, 32], strides = [1, 1]} : vector<8x128xf32> to vector<8x32xf32>
    %28 = vector.extract_strided_slice %23 {offsets = [0, 96], sizes = [8, 32], strides = [1, 1]} : vector<8x128xf32> to vector<8x32xf32>
    %29 = arith.mulf %26, %13 : vector<8x32xf32>
    %30 = arith.mulf %25, %27 : vector<8x32xf32>
    %31 = arith.addf %29, %30 : vector<8x32xf32>
    %32 = math.tanh %31 : vector<8x32xf32>
    %33 = arith.mulf %28, %32 : vector<8x32xf32>
    %34 = arith.truncf %33 : vector<8x32xf32> to vector<8x32xbf16>
    %cst_19 = arith.constant dense<0.000000e+00> : vector<8x512xf32>
    %35 = tpu.matmul %34, %9, %cst_19 {dimension_numbers = #tpu.dot_dimension_numbers<[1], [0], [0], [1], [0, 0, 1, 1], [], []>} : vector<8x32xbf16>, vector<32x512xbf16>, vector<8x512xf32> -> vector<8x512xf32>
    %36 = vector.broadcast %10 : vector<1x512xf32> to vector<8x512xf32>
    %37 = arith.addf %35, %36 : vector<8x512xf32>
    %c0_20 = arith.constant 0 : index
    %c0_21 = arith.constant 0 : index
    %c0_22 = arith.constant 0 : index
    %38 = vector.load %arg8[%c0_20, %c0_21, %c0_22] : memref<7x8x512xf32, #tpu.memory_space<vmem>>, vector<1x8x512xf32>
    %39 = vector.shape_cast %38 : vector<1x8x512xf32> to vector<8x512xf32>
    %40 = vector.shape_cast %37 : vector<8x512xf32> to vector<1x8x512xf32>
    tpu.vector_store %arg8[%c0_20, %c0_21, %c0_22], %40 {strides = array<i32>} : memref<7x8x512xf32, #tpu.memory_space<vmem>>, vector<1x8x512xf32>,
    %41 = vector.extract_strided_slice %11 {offsets = [0, 0, 0], sizes = [1, 8, 32], strides = [1, 1, 1]} : vector<8x8x32xf32> to vector<1x8x32xf32>
    %42 = vector.shape_cast %41 : vector<1x8x32xf32> to vector<8x32xf32>
    %43 = arith.mulf %33, %42 : vector<8x32xf32>
    %44 = vector.extract_strided_slice %11 {offsets = [0, 0, 0], sizes = [1, 8, 32], strides = [1, 1, 1]} : vector<8x8x32xf32> to vector<1x8x32xf32>
    %45 = vector.shape_cast %44 : vector<1x8x32xf32> to vector<8x32xf32>
    %46 = arith.mulf %31, %45 : vector<8x32xf32>
    %47 = vector.extract_strided_slice %7 {offsets = [1, 0, 0], sizes = [1, 8, 128], strides = [1, 1, 1]} : vector<8x8x128xf32> to vector<1x8x128xf32>
    %48 = vector.shape_cast %47 : vector<1x8x128xf32> to vector<8x128xf32>
    %49 = arith.truncf %43 : vector<8x32xf32> to vector<8x32xbf16>
    %cst_23 = arith.constant dense<0.000000e+00> : vector<8x128xf32>
    %50 = tpu.matmul %49, %8, %cst_23 {dimension_numbers = #tpu.dot_dimension_numbers<[1], [0], [0], [1], [0, 0, 1, 1], [], []>} : vector<8x32xbf16>, vector<32x128xbf16>, vector<8x128xf32> -> vector<8x128xf32>
    %51 = arith.addf %48, %50 : vector<8x128xf32>
    %52 = arith.negf %51 : vector<8x128xf32>
    %53 = math.exp %52 : vector<8x128xf32>
    %cst_24 = arith.constant 1.000000e+00 : f32
    %54 = vector.broadcast %cst_24 : f32 to vector<8x128xf32>
    %55 = arith.addf %54, %53 : vector<8x128xf32>
    %56 = arith.divf %54, %55 : vector<8x128xf32>
    %57 = math.tanh %51 : vector<8x128xf32>
    %58 = vector.extract_strided_slice %56 {offsets = [0, 0], sizes = [8, 32], strides = [1, 1]} : vector<8x128xf32> to vector<8x32xf32>
    %59 = vector.extract_strided_slice %56 {offsets = [0, 32], sizes = [8, 32], strides = [1, 1]} : vector<8x128xf32> to vector<8x32xf32>
    %60 = vector.extract_strided_slice %57 {offsets = [0, 64], sizes = [8, 32], strides = [1, 1]} : vector<8x128xf32> to vector<8x32xf32>
    %61 = vector.extract_strided_slice %56 {offsets = [0, 96], sizes = [8, 32], strides = [1, 1]} : vector<8x128xf32> to vector<8x32xf32>
    %62 = arith.mulf %59, %46 : vector<8x32xf32>
    %63 = arith.mulf %58, %60 : vector<8x32xf32>
    %64 = arith.addf %62, %63 : vector<8x32xf32>
    %65 = math.tanh %64 : vector<8x32xf32>
    %66 = arith.mulf %61, %65 : vector<8x32xf32>
    %67 = arith.truncf %66 : vector<8x32xf32> to vector<8x32xbf16>
    %cst_25 = arith.constant dense<0.000000e+00> : vector<8x512xf32>
    %68 = tpu.matmul %67, %9, %cst_25 {dimension_numbers = #tpu.dot_dimension_numbers<[1], [0], [0], [1], [0, 0, 1, 1], [], []>} : vector<8x32xbf16>, vector<32x512xbf16>, vector<8x512xf32> -> vector<8x512xf32>
    %69 = vector.broadcast %10 : vector<1x512xf32> to vector<8x512xf32>
    %70 = arith.addf %68, %69 : vector<8x512xf32>
    %c1 = arith.constant 1 : index
    %c0_26 = arith.constant 0 : index
    %c0_27 = arith.constant 0 : index
    %71 = vector.load %arg8[%c1, %c0_26, %c0_27] : memref<7x8x512xf32, #tpu.memory_space<vmem>>, vector<1x8x512xf32>
    %72 = vector.shape_cast %71 : vector<1x8x512xf32> to vector<8x512xf32>
    %73 = vector.shape_cast %70 : vector<8x512xf32> to vector<1x8x512xf32>
    tpu.vector_store %arg8[%c1, %c0_26, %c0_27], %73 {strides = array<i32>} : memref<7x8x512xf32, #tpu.memory_space<vmem>>, vector<1x8x512xf32>,
    %74 = vector.extract_strided_slice %11 {offsets = [1, 0, 0], sizes = [1, 8, 32], strides = [1, 1, 1]} : vector<8x8x32xf32> to vector<1x8x32xf32>
    %75 = vector.shape_cast %74 : vector<1x8x32xf32> to vector<8x32xf32>
    %76 = arith.mulf %66, %75 : vector<8x32xf32>
    %77 = vector.extract_strided_slice %11 {offsets = [1, 0, 0], sizes = [1, 8, 32], strides = [1, 1, 1]} : vector<8x8x32xf32> to vector<1x8x32xf32>
    %78 = vector.shape_cast %77 : vector<1x8x32xf32> to vector<8x32xf32>
    %79 = arith.mulf %64, %78 : vector<8x32xf32>
    %80 = vector.extract_strided_slice %7 {offsets = [2, 0, 0], sizes = [1, 8, 128], strides = [1, 1, 1]} : vector<8x8x128xf32> to vector<1x8x128xf32>
    %81 = vector.shape_cast %80 : vector<1x8x128xf32> to vector<8x128xf32>
    %82 = arith.truncf %76 : vector<8x32xf32> to vector<8x32xbf16>
    %cst_28 = arith.constant dense<0.000000e+00> : vector<8x128xf32>
    %83 = tpu.matmul %82, %8, %cst_28 {dimension_numbers = #tpu.dot_dimension_numbers<[1], [0], [0], [1], [0, 0, 1, 1], [], []>} : vector<8x32xbf16>, vector<32x128xbf16>, vector<8x128xf32> -> vector<8x128xf32>
    %84 = arith.addf %81, %83 : vector<8x128xf32>
    %85 = arith.negf %84 : vector<8x128xf32>
    %86 = math.exp %85 : vector<8x128xf32>
    %cst_29 = arith.constant 1.000000e+00 : f32
    %87 = vector.broadcast %cst_29 : f32 to vector<8x128xf32>
    %88 = arith.addf %87, %86 : vector<8x128xf32>
    %89 = arith.divf %87, %88 : vector<8x128xf32>
    %90 = math.tanh %84 : vector<8x128xf32>
    %91 = vector.extract_strided_slice %89 {offsets = [0, 0], sizes = [8, 32], strides = [1, 1]} : vector<8x128xf32> to vector<8x32xf32>
    %92 = vector.extract_strided_slice %89 {offsets = [0, 32], sizes = [8, 32], strides = [1, 1]} : vector<8x128xf32> to vector<8x32xf32>
    %93 = vector.extract_strided_slice %90 {offsets = [0, 64], sizes = [8, 32], strides = [1, 1]} : vector<8x128xf32> to vector<8x32xf32>
    %94 = vector.extract_strided_slice %89 {offsets = [0, 96], sizes = [8, 32], strides = [1, 1]} : vector<8x128xf32> to vector<8x32xf32>
    %95 = arith.mulf %92, %79 : vector<8x32xf32>
    %96 = arith.mulf %91, %93 : vector<8x32xf32>
    %97 = arith.addf %95, %96 : vector<8x32xf32>
    %98 = math.tanh %97 : vector<8x32xf32>
    %99 = arith.mulf %94, %98 : vector<8x32xf32>
    %100 = arith.truncf %99 : vector<8x32xf32> to vector<8x32xbf16>
    %cst_30 = arith.constant dense<0.000000e+00> : vector<8x512xf32>
    %101 = tpu.matmul %100, %9, %cst_30 {dimension_numbers = #tpu.dot_dimension_numbers<[1], [0], [0], [1], [0, 0, 1, 1], [], []>} : vector<8x32xbf16>, vector<32x512xbf16>, vector<8x512xf32> -> vector<8x512xf32>
    %102 = vector.broadcast %10 : vector<1x512xf32> to vector<8x512xf32>
    %103 = arith.addf %101, %102 : vector<8x512xf32>
    %c2 = arith.constant 2 : index
    %c0_31 = arith.constant 0 : index
    %c0_32 = arith.constant 0 : index
    %104 = vector.load %arg8[%c2, %c0_31, %c0_32] : memref<7x8x512xf32, #tpu.memory_space<vmem>>, vector<1x8x512xf32>
    %105 = vector.shape_cast %104 : vector<1x8x512xf32> to vector<8x512xf32>
    %106 = vector.shape_cast %103 : vector<8x512xf32> to vector<1x8x512xf32>
    tpu.vector_store %arg8[%c2, %c0_31, %c0_32], %106 {strides = array<i32>} : memref<7x8x512xf32, #tpu.memory_space<vmem>>, vector<1x8x512xf32>,
    %107 = vector.extract_strided_slice %11 {offsets = [2, 0, 0], sizes = [1, 8, 32], strides = [1, 1, 1]} : vector<8x8x32xf32> to vector<1x8x32xf32>
    %108 = vector.shape_cast %107 : vector<1x8x32xf32> to vector<8x32xf32>
    %109 = arith.mulf %99, %108 : vector<8x32xf32>
    %110 = vector.extract_strided_slice %11 {offsets = [2, 0, 0], sizes = [1, 8, 32], strides = [1, 1, 1]} : vector<8x8x32xf32> to vector<1x8x32xf32>
    %111 = vector.shape_cast %110 : vector<1x8x32xf32> to vector<8x32xf32>
    %112 = arith.mulf %97, %111 : vector<8x32xf32>
    %113 = vector.extract_strided_slice %7 {offsets = [3, 0, 0], sizes = [1, 8, 128], strides = [1, 1, 1]} : vector<8x8x128xf32> to vector<1x8x128xf32>
    %114 = vector.shape_cast %113 : vector<1x8x128xf32> to vector<8x128xf32>
    %115 = arith.truncf %109 : vector<8x32xf32> to vector<8x32xbf16>
    %cst_33 = arith.constant dense<0.000000e+00> : vector<8x128xf32>
    %116 = tpu.matmul %115, %8, %cst_33 {dimension_numbers = #tpu.dot_dimension_numbers<[1], [0], [0], [1], [0, 0, 1, 1], [], []>} : vector<8x32xbf16>, vector<32x128xbf16>, vector<8x128xf32> -> vector<8x128xf32>
    %117 = arith.addf %114, %116 : vector<8x128xf32>
    %118 = arith.negf %117 : vector<8x128xf32>
    %119 = math.exp %118 : vector<8x128xf32>
    %cst_34 = arith.constant 1.000000e+00 : f32
    %120 = vector.broadcast %cst_34 : f32 to vector<8x128xf32>
    %121 = arith.addf %120, %119 : vector<8x128xf32>
    %122 = arith.divf %120, %121 : vector<8x128xf32>
    %123 = math.tanh %117 : vector<8x128xf32>
    %124 = vector.extract_strided_slice %122 {offsets = [0, 0], sizes = [8, 32], strides = [1, 1]} : vector<8x128xf32> to vector<8x32xf32>
    %125 = vector.extract_strided_slice %122 {offsets = [0, 32], sizes = [8, 32], strides = [1, 1]} : vector<8x128xf32> to vector<8x32xf32>
    %126 = vector.extract_strided_slice %123 {offsets = [0, 64], sizes = [8, 32], strides = [1, 1]} : vector<8x128xf32> to vector<8x32xf32>
    %127 = vector.extract_strided_slice %122 {offsets = [0, 96], sizes = [8, 32], strides = [1, 1]} : vector<8x128xf32> to vector<8x32xf32>
    %128 = arith.mulf %125, %112 : vector<8x32xf32>
    %129 = arith.mulf %124, %126 : vector<8x32xf32>
    %130 = arith.addf %128, %129 : vector<8x32xf32>
    %131 = math.tanh %130 : vector<8x32xf32>
    %132 = arith.mulf %127, %131 : vector<8x32xf32>
    %133 = arith.truncf %132 : vector<8x32xf32> to vector<8x32xbf16>
    %cst_35 = arith.constant dense<0.000000e+00> : vector<8x512xf32>
    %134 = tpu.matmul %133, %9, %cst_35 {dimension_numbers = #tpu.dot_dimension_numbers<[1], [0], [0], [1], [0, 0, 1, 1], [], []>} : vector<8x32xbf16>, vector<32x512xbf16>, vector<8x512xf32> -> vector<8x512xf32>
    %135 = vector.broadcast %10 : vector<1x512xf32> to vector<8x512xf32>
    %136 = arith.addf %134, %135 : vector<8x512xf32>
    %c3 = arith.constant 3 : index
    %c0_36 = arith.constant 0 : index
    %c0_37 = arith.constant 0 : index
    %137 = vector.load %arg8[%c3, %c0_36, %c0_37] : memref<7x8x512xf32, #tpu.memory_space<vmem>>, vector<1x8x512xf32>
    %138 = vector.shape_cast %137 : vector<1x8x512xf32> to vector<8x512xf32>
    %139 = vector.shape_cast %136 : vector<8x512xf32> to vector<1x8x512xf32>
    tpu.vector_store %arg8[%c3, %c0_36, %c0_37], %139 {strides = array<i32>} : memref<7x8x512xf32, #tpu.memory_space<vmem>>, vector<1x8x512xf32>,
    %140 = vector.extract_strided_slice %11 {offsets = [3, 0, 0], sizes = [1, 8, 32], strides = [1, 1, 1]} : vector<8x8x32xf32> to vector<1x8x32xf32>
    %141 = vector.shape_cast %140 : vector<1x8x32xf32> to vector<8x32xf32>
    %142 = arith.mulf %132, %141 : vector<8x32xf32>
    %143 = vector.extract_strided_slice %11 {offsets = [3, 0, 0], sizes = [1, 8, 32], strides = [1, 1, 1]} : vector<8x8x32xf32> to vector<1x8x32xf32>
    %144 = vector.shape_cast %143 : vector<1x8x32xf32> to vector<8x32xf32>
    %145 = arith.mulf %130, %144 : vector<8x32xf32>
    %146 = vector.extract_strided_slice %7 {offsets = [4, 0, 0], sizes = [1, 8, 128], strides = [1, 1, 1]} : vector<8x8x128xf32> to vector<1x8x128xf32>
    %147 = vector.shape_cast %146 : vector<1x8x128xf32> to vector<8x128xf32>
    %148 = arith.truncf %142 : vector<8x32xf32> to vector<8x32xbf16>
    %cst_38 = arith.constant dense<0.000000e+00> : vector<8x128xf32>
    %149 = tpu.matmul %148, %8, %cst_38 {dimension_numbers = #tpu.dot_dimension_numbers<[1], [0], [0], [1], [0, 0, 1, 1], [], []>} : vector<8x32xbf16>, vector<32x128xbf16>, vector<8x128xf32> -> vector<8x128xf32>
    %150 = arith.addf %147, %149 : vector<8x128xf32>
    %151 = arith.negf %150 : vector<8x128xf32>
    %152 = math.exp %151 : vector<8x128xf32>
    %cst_39 = arith.constant 1.000000e+00 : f32
    %153 = vector.broadcast %cst_39 : f32 to vector<8x128xf32>
    %154 = arith.addf %153, %152 : vector<8x128xf32>
    %155 = arith.divf %153, %154 : vector<8x128xf32>
    %156 = math.tanh %150 : vector<8x128xf32>
    %157 = vector.extract_strided_slice %155 {offsets = [0, 0], sizes = [8, 32], strides = [1, 1]} : vector<8x128xf32> to vector<8x32xf32>
    %158 = vector.extract_strided_slice %155 {offsets = [0, 32], sizes = [8, 32], strides = [1, 1]} : vector<8x128xf32> to vector<8x32xf32>
    %159 = vector.extract_strided_slice %156 {offsets = [0, 64], sizes = [8, 32], strides = [1, 1]} : vector<8x128xf32> to vector<8x32xf32>
    %160 = vector.extract_strided_slice %155 {offsets = [0, 96], sizes = [8, 32], strides = [1, 1]} : vector<8x128xf32> to vector<8x32xf32>
    %161 = arith.mulf %158, %145 : vector<8x32xf32>
    %162 = arith.mulf %157, %159 : vector<8x32xf32>
    %163 = arith.addf %161, %162 : vector<8x32xf32>
    %164 = math.tanh %163 : vector<8x32xf32>
    %165 = arith.mulf %160, %164 : vector<8x32xf32>
    %166 = arith.truncf %165 : vector<8x32xf32> to vector<8x32xbf16>
    %cst_40 = arith.constant dense<0.000000e+00> : vector<8x512xf32>
    %167 = tpu.matmul %166, %9, %cst_40 {dimension_numbers = #tpu.dot_dimension_numbers<[1], [0], [0], [1], [0, 0, 1, 1], [], []>} : vector<8x32xbf16>, vector<32x512xbf16>, vector<8x512xf32> -> vector<8x512xf32>
    %168 = vector.broadcast %10 : vector<1x512xf32> to vector<8x512xf32>
    %169 = arith.addf %167, %168 : vector<8x512xf32>
    %c4 = arith.constant 4 : index
    %c0_41 = arith.constant 0 : index
    %c0_42 = arith.constant 0 : index
    %170 = vector.load %arg8[%c4, %c0_41, %c0_42] : memref<7x8x512xf32, #tpu.memory_space<vmem>>, vector<1x8x512xf32>
    %171 = vector.shape_cast %170 : vector<1x8x512xf32> to vector<8x512xf32>
    %172 = vector.shape_cast %169 : vector<8x512xf32> to vector<1x8x512xf32>
    tpu.vector_store %arg8[%c4, %c0_41, %c0_42], %172 {strides = array<i32>} : memref<7x8x512xf32, #tpu.memory_space<vmem>>, vector<1x8x512xf32>,
    %173 = vector.extract_strided_slice %11 {offsets = [4, 0, 0], sizes = [1, 8, 32], strides = [1, 1, 1]} : vector<8x8x32xf32> to vector<1x8x32xf32>
    %174 = vector.shape_cast %173 : vector<1x8x32xf32> to vector<8x32xf32>
    %175 = arith.mulf %165, %174 : vector<8x32xf32>
    %176 = vector.extract_strided_slice %11 {offsets = [4, 0, 0], sizes = [1, 8, 32], strides = [1, 1, 1]} : vector<8x8x32xf32> to vector<1x8x32xf32>
    %177 = vector.shape_cast %176 : vector<1x8x32xf32> to vector<8x32xf32>
    %178 = arith.mulf %163, %177 : vector<8x32xf32>
    %179 = vector.extract_strided_slice %7 {offsets = [5, 0, 0], sizes = [1, 8, 128], strides = [1, 1, 1]} : vector<8x8x128xf32> to vector<1x8x128xf32>
    %180 = vector.shape_cast %179 : vector<1x8x128xf32> to vector<8x128xf32>
    %181 = arith.truncf %175 : vector<8x32xf32> to vector<8x32xbf16>
    %cst_43 = arith.constant dense<0.000000e+00> : vector<8x128xf32>
    %182 = tpu.matmul %181, %8, %cst_43 {dimension_numbers = #tpu.dot_dimension_numbers<[1], [0], [0], [1], [0, 0, 1, 1], [], []>} : vector<8x32xbf16>, vector<32x128xbf16>, vector<8x128xf32> -> vector<8x128xf32>
    %183 = arith.addf %180, %182 : vector<8x128xf32>
    %184 = arith.negf %183 : vector<8x128xf32>
    %185 = math.exp %184 : vector<8x128xf32>
    %cst_44 = arith.constant 1.000000e+00 : f32
    %186 = vector.broadcast %cst_44 : f32 to vector<8x128xf32>
    %187 = arith.addf %186, %185 : vector<8x128xf32>
    %188 = arith.divf %186, %187 : vector<8x128xf32>
    %189 = math.tanh %183 : vector<8x128xf32>
    %190 = vector.extract_strided_slice %188 {offsets = [0, 0], sizes = [8, 32], strides = [1, 1]} : vector<8x128xf32> to vector<8x32xf32>
    %191 = vector.extract_strided_slice %188 {offsets = [0, 32], sizes = [8, 32], strides = [1, 1]} : vector<8x128xf32> to vector<8x32xf32>
    %192 = vector.extract_strided_slice %189 {offsets = [0, 64], sizes = [8, 32], strides = [1, 1]} : vector<8x128xf32> to vector<8x32xf32>
    %193 = vector.extract_strided_slice %188 {offsets = [0, 96], sizes = [8, 32], strides = [1, 1]} : vector<8x128xf32> to vector<8x32xf32>
    %194 = arith.mulf %191, %178 : vector<8x32xf32>
    %195 = arith.mulf %190, %192 : vector<8x32xf32>
    %196 = arith.addf %194, %195 : vector<8x32xf32>
    %197 = math.tanh %196 : vector<8x32xf32>
    %198 = arith.mulf %193, %197 : vector<8x32xf32>
    %199 = arith.truncf %198 : vector<8x32xf32> to vector<8x32xbf16>
    %cst_45 = arith.constant dense<0.000000e+00> : vector<8x512xf32>
    %200 = tpu.matmul %199, %9, %cst_45 {dimension_numbers = #tpu.dot_dimension_numbers<[1], [0], [0], [1], [0, 0, 1, 1], [], []>} : vector<8x32xbf16>, vector<32x512xbf16>, vector<8x512xf32> -> vector<8x512xf32>
    %201 = vector.broadcast %10 : vector<1x512xf32> to vector<8x512xf32>
    %202 = arith.addf %200, %201 : vector<8x512xf32>
    %c5 = arith.constant 5 : index
    %c0_46 = arith.constant 0 : index
    %c0_47 = arith.constant 0 : index
    %203 = vector.load %arg8[%c5, %c0_46, %c0_47] : memref<7x8x512xf32, #tpu.memory_space<vmem>>, vector<1x8x512xf32>
    %204 = vector.shape_cast %203 : vector<1x8x512xf32> to vector<8x512xf32>
    %205 = vector.shape_cast %202 : vector<8x512xf32> to vector<1x8x512xf32>
    tpu.vector_store %arg8[%c5, %c0_46, %c0_47], %205 {strides = array<i32>} : memref<7x8x512xf32, #tpu.memory_space<vmem>>, vector<1x8x512xf32>,
    %206 = vector.extract_strided_slice %11 {offsets = [5, 0, 0], sizes = [1, 8, 32], strides = [1, 1, 1]} : vector<8x8x32xf32> to vector<1x8x32xf32>
    %207 = vector.shape_cast %206 : vector<1x8x32xf32> to vector<8x32xf32>
    %208 = arith.mulf %198, %207 : vector<8x32xf32>
    %209 = vector.extract_strided_slice %11 {offsets = [5, 0, 0], sizes = [1, 8, 32], strides = [1, 1, 1]} : vector<8x8x32xf32> to vector<1x8x32xf32>
    %210 = vector.shape_cast %209 : vector<1x8x32xf32> to vector<8x32xf32>
    %211 = arith.mulf %196, %210 : vector<8x32xf32>
    %212 = vector.extract_strided_slice %7 {offsets = [6, 0, 0], sizes = [1, 8, 128], strides = [1, 1, 1]} : vector<8x8x128xf32> to vector<1x8x128xf32>
    %213 = vector.shape_cast %212 : vector<1x8x128xf32> to vector<8x128xf32>
    %214 = arith.truncf %208 : vector<8x32xf32> to vector<8x32xbf16>
    %cst_48 = arith.constant dense<0.000000e+00> : vector<8x128xf32>
    %215 = tpu.matmul %214, %8, %cst_48 {dimension_numbers = #tpu.dot_dimension_numbers<[1], [0], [0], [1], [0, 0, 1, 1], [], []>} : vector<8x32xbf16>, vector<32x128xbf16>, vector<8x128xf32> -> vector<8x128xf32>
    %216 = arith.addf %213, %215 : vector<8x128xf32>
    %217 = arith.negf %216 : vector<8x128xf32>
    %218 = math.exp %217 : vector<8x128xf32>
    %cst_49 = arith.constant 1.000000e+00 : f32
    %219 = vector.broadcast %cst_49 : f32 to vector<8x128xf32>
    %220 = arith.addf %219, %218 : vector<8x128xf32>
    %221 = arith.divf %219, %220 : vector<8x128xf32>
    %222 = math.tanh %216 : vector<8x128xf32>
    %223 = vector.extract_strided_slice %221 {offsets = [0, 0], sizes = [8, 32], strides = [1, 1]} : vector<8x128xf32> to vector<8x32xf32>
    %224 = vector.extract_strided_slice %221 {offsets = [0, 32], sizes = [8, 32], strides = [1, 1]} : vector<8x128xf32> to vector<8x32xf32>
    %225 = vector.extract_strided_slice %222 {offsets = [0, 64], sizes = [8, 32], strides = [1, 1]} : vector<8x128xf32> to vector<8x32xf32>
    %226 = vector.extract_strided_slice %221 {offsets = [0, 96], sizes = [8, 32], strides = [1, 1]} : vector<8x128xf32> to vector<8x32xf32>
    %227 = arith.mulf %224, %211 : vector<8x32xf32>
    %228 = arith.mulf %223, %225 : vector<8x32xf32>
    %229 = arith.addf %227, %228 : vector<8x32xf32>
    %230 = math.tanh %229 : vector<8x32xf32>
    %231 = arith.mulf %226, %230 : vector<8x32xf32>
    %232 = arith.truncf %231 : vector<8x32xf32> to vector<8x32xbf16>
    %cst_50 = arith.constant dense<0.000000e+00> : vector<8x512xf32>
    %233 = tpu.matmul %232, %9, %cst_50 {dimension_numbers = #tpu.dot_dimension_numbers<[1], [0], [0], [1], [0, 0, 1, 1], [], []>} : vector<8x32xbf16>, vector<32x512xbf16>, vector<8x512xf32> -> vector<8x512xf32>
    %234 = vector.broadcast %10 : vector<1x512xf32> to vector<8x512xf32>
    %235 = arith.addf %233, %234 : vector<8x512xf32>
    %c6 = arith.constant 6 : index
    %c0_51 = arith.constant 0 : index
    %c0_52 = arith.constant 0 : index
    %236 = vector.load %arg8[%c6, %c0_51, %c0_52] : memref<7x8x512xf32, #tpu.memory_space<vmem>>, vector<1x8x512xf32>
    %237 = vector.shape_cast %236 : vector<1x8x512xf32> to vector<8x512xf32>
    %238 = vector.shape_cast %235 : vector<8x512xf32> to vector<1x8x512xf32>
    tpu.vector_store %arg8[%c6, %c0_51, %c0_52], %238 {strides = array<i32>} : memref<7x8x512xf32, #tpu.memory_space<vmem>>, vector<1x8x512xf32>,
    return
  }
  func.func @transform_0(%arg0: i32) -> (i32, i32, i32) {
    %c0_i32 = arith.constant 0 : i32
    %c0_i32_0 = arith.constant 0 : i32
    %c0_i32_1 = arith.constant 0 : i32
    return %c0_i32, %arg0, %c0_i32_0 : i32, i32, i32
  }
  func.func @transform_1(%arg0: i32) -> (i32, i32, i32) {
    %c0_i32 = arith.constant 0 : i32
    %c0_i32_0 = arith.constant 0 : i32
    %c0_i32_1 = arith.constant 0 : i32
    return %c0_i32, %arg0, %c0_i32_0 : i32, i32, i32
  }
  func.func @transform_2(%arg0: i32) -> (i32, i32) {
    %c0_i32 = arith.constant 0 : i32
    %c0_i32_0 = arith.constant 0 : i32
    %c0_i32_1 = arith.constant 0 : i32
    return %c0_i32, %c0_i32_0 : i32, i32
  }
  func.func @transform_3(%arg0: i32) -> (i32, i32) {
    %c0_i32 = arith.constant 0 : i32
    %c0_i32_0 = arith.constant 0 : i32
    %c0_i32_1 = arith.constant 0 : i32
    return %c0_i32, %c0_i32_0 : i32, i32
  }
  func.func @transform_4(%arg0: i32) -> (i32, i32) {
    %c0_i32 = arith.constant 0 : i32
    %c0_i32_0 = arith.constant 0 : i32
    %c0_i32_1 = arith.constant 0 : i32
    return %c0_i32, %c0_i32_0 : i32, i32
  }
  func.func @transform_5(%arg0: i32) -> (i32, i32) {
    %c0_i32 = arith.constant 0 : i32
    %c0_i32_0 = arith.constant 0 : i32
    %c0_i32_1 = arith.constant 0 : i32
    return %c0_i32, %c0_i32_0 : i32, i32
  }
  func.func @transform_6(%arg0: i32) -> (i32, i32) {
    %c0_i32 = arith.constant 0 : i32
    %c0_i32_0 = arith.constant 0 : i32
    %c0_i32_1 = arith.constant 0 : i32
    return %c0_i32, %c0_i32_0 : i32, i32
  }
  func.func @transform_7(%arg0: i32) -> (i32, i32, i32) {
    %c0_i32 = arith.constant 0 : i32
    %c0_i32_0 = arith.constant 0 : i32
    %c0_i32_1 = arith.constant 0 : i32
    return %c0_i32, %arg0, %c0_i32_0 : i32, i32, i32
  }
}

</mosaic_0001>

<llo_original>
// kernel: rnn_model_forward.1
$region0: #{rnn_model_forward.1}
  #allocation0 [shape = 'u32[]', space=smem, size = 0x4, offset = 0x4, fixed_abs, tag = 'smem constant byte address 0x4 - core index']
  #allocation1 [shape = 'u32[144,128]{1,0:T(1,128)}', space=vmem, size = 0x12000, scoped, tag = 'internal scratch']
  %s0 = inlined_call_operand.vmem [shape: bf16[8,8,40], index: 0, kind: input, shape index: {}]
  %s1 = inlined_call_operand.vmem [shape: f32[8,8,32], index: 1, kind: input, shape index: {}]
  %s2 = inlined_call_operand.vmem [shape: bf16[40,128], index: 2, kind: input, shape index: {}]
  %s3 = inlined_call_operand.vmem [shape: bf16[32,128], index: 3, kind: input, shape index: {}]
  %s4 = inlined_call_operand.vmem [shape: f32[1,128], index: 4, kind: input, shape index: {}]
  %s5 = inlined_call_operand.vmem [shape: bf16[32,512], index: 5, kind: input, shape index: {}]
  %s6 = inlined_call_operand.vmem [shape: f32[1,512], index: 6, kind: input, shape index: {}]
  %s7 = inlined_call_operand.vmem [shape: f32[7,8,512], index: 7, kind: output, shape index: {}]
  %s8 = sld [smem:[#allocation0]]
  $region38: #{rnn_model_forward.1} parent=0
    _
  %s10 = ssub.s32 1, %s8
  %s11 = scalar_select 0, %s10, %s8
  // Predicated region
  $region2: #{rnn_model_forward.1} parent=0 // pred_check
    _
  $region3: #{rnn_model_forward.1} parent=0 // pred_check_branch
    %13 = sbr.rel (0) target = $region5
  $region4: #{rnn_model_forward.1} parent=0 // pred_region
    _
  $region5: #{rnn_model_forward.1} parent=0 // pred_fallthru
    _
  // Predicated region
  $region6: #{rnn_model_forward.1} parent=0 // pred_check
    _
  $region7: #{rnn_model_forward.1} parent=0 // pred_check_branch
    %15 = sbr.rel (0) target = $region9
  $region8: #{rnn_model_forward.1} parent=0 // pred_region
    _
  $region9: #{rnn_model_forward.1} parent=0 // pred_fallthru
    _
  // Predicated region
  $region10: #{rnn_model_forward.1} parent=0 // pred_check
    _
  $region11: #{rnn_model_forward.1} parent=0 // pred_check_branch
    %17 = sbr.rel (0) target = $region13
  $region12: #{rnn_model_forward.1} parent=0 // pred_region
    _
  $region13: #{rnn_model_forward.1} parent=0 // pred_fallthru
    _
  // Predicated region
  $region14: #{rnn_model_forward.1} parent=0 // pred_check
    _
  $region15: #{rnn_model_forward.1} parent=0 // pred_check_branch
    %19 = sbr.rel (0) target = $region17
  $region16: #{rnn_model_forward.1} parent=0 // pred_region
    _
  $region17: #{rnn_model_forward.1} parent=0 // pred_fallthru
    _
  // Predicated region
  $region18: #{rnn_model_forward.1} parent=0 // pred_check
    _
  $region19: #{rnn_model_forward.1} parent=0 // pred_check_branch
    %21 = sbr.rel (0) target = $region21
  $region20: #{rnn_model_forward.1} parent=0 // pred_region
    _
  $region21: #{rnn_model_forward.1} parent=0 // pred_fallthru
    _
  // Predicated region
  $region22: #{rnn_model_forward.1} parent=0 // pred_check
    _
  $region23: #{rnn_model_forward.1} parent=0 // pred_check_branch
    %23 = sbr.rel (0) target = $region25
  $region24: #{rnn_model_forward.1} parent=0 // pred_region
    _
  $region25: #{rnn_model_forward.1} parent=0 // pred_fallthru
    _
  // Predicated region
  $region26: #{rnn_model_forward.1} parent=0 // pred_check
    _
  $region27: #{rnn_model_forward.1} parent=0 // pred_check_branch
    %25 = sbr.rel (0) target = $region29
  $region28: #{rnn_model_forward.1} parent=0 // pred_region
    _
  $region29: #{rnn_model_forward.1} parent=0 // pred_fallthru
    _
  %v27 = vld [vmem:[%s0] sm:$0xf]
  %v28 = vld [vmem:[%s0 + $0x4] sm:$0xf]
  %v29 = vld [vmem:[%s0 + $0x8] sm:$0xf]
  %v30 = vld [vmem:[%s0 + $0xc] sm:$0xf]
  %v31 = vld [vmem:[%s0 + $0x10] sm:$0xf]
  %v32 = vld [vmem:[%s0 + $0x14] sm:$0xf]
  %v33 = vld [vmem:[%s0 + $0x18] sm:$0xf]
  %v34 = vld [vmem:[%s0 + $0x1c] sm:$0xf]
  %v35 = vld [vmem:[%s2] sm:$0xf]
  %v36 = vld [vmem:[%s2 + $0x4] sm:$0xf]
  %v37 = vld [vmem:[%s2 + $0x8] sm:$0xf]
  %v38 = vld [vmem:[%s2 + $0xc] sm:$0xf]
  %v39 = vld [vmem:[%s2 + $0x10] sm:$0xf]
  %v40 = vld [vmem:[%s4] sm:$0x1]
  %v42 = vlaneseq
  %v43 = vshrl.u32 %v42, 7
  %v44 = vsub.s32 0, %v43
  %v45 = vrot.slane %v40, %v44
  %v55 = vunpack.c.l.b16 %v27
  %v56 = vunpack.c.l.b16 %v28
  %v57 = vunpack.c.l.b16 %v29
  %v58 = vunpack.c.l.b16 %v30
  %v59 = vunpack.c.l.b16 %v31
  %v60 = vunpack.c.l.b16 %v32
  %v61 = vunpack.c.l.b16 %v33
  %v62 = vunpack.c.l.b16 %v34
  %v63 = vpack.c.b16 %v56, %v55
  %v64 = vpack.c.b16 %v58, %v57
  %v65 = vpack.c.b16 %v60, %v59
  %v66 = vpack.c.b16 %v62, %v61
  %v72 = vunpack.c.l.b16 %v35
  %v73 = vunpack.c.l.b16 %v36
  %v74 = vunpack.c.l.b16 %v37
  %v75 = vunpack.c.l.b16 %v38
  %v76 = vunpack.c.l.b16 %v39
  %v77 = vpack.c.b16 %v73, %v72
  %v78 = vpack.c.b16 %v75, %v74
  %v79 = vpack.c.b16 %v76, %v76
  %vm82 = vcmask 326656
  %v84 = vsel %vm82, %v63, 0
  %v87 = vsel %vm82, %v64, 0
  %v90 = vsel %vm82, %v65, 0
  %v93 = vsel %vm82, %v66, 0
  %vm95 = vcmask 1043456
  %v97 = vsel %vm95, %v79, 0
  %99 = vmatprep.subr.bf16.mxu0 0
  %100 = vmatpush1.bf16.msra.mxu0 %v77
  %101 = vmatprep.subr.bf16.mxu0 0
  %102 = vmatpush1.bf16.msra.mxu0 %v78
  %103 = vmatprep.subr.bf16.mxu0 0
  %104 = vmatpush1.bf16.msra.mxu0 %v97
  %105 = vmatprep.subr.bf16.mxu0 0
  %106 = vmatpush1.bf16.msra.mxu0 0
  %107 = vmatprep.subr.bf16.mxu0 0
  %108 = vmatpush1.bf16.msra.mxu0 0
  %109 = vmatprep.subr.bf16.mxu0 0
  %110 = vmatpush1.bf16.msra.mxu0 0
  %111 = vmatprep.subr.bf16.mxu0 0
  %112 = vmatpush1.bf16.msra.mxu0 0
  %113 = vmatprep.subr.bf16.mxu0 0
  %114 = vmatpush1.bf16.msra.mxu0 0
  %115 = vmatprep.subr.bf16.mxu0 0
  %116 = vmatpush1.bf16.msra.mxu0 0
  %117 = vmatprep.subr.bf16.mxu0 0
  %118 = vmatpush1.bf16.msra.mxu0 0
  %119 = vmatprep.subr.bf16.mxu0 0
  %120 = vmatpush1.bf16.msra.mxu0 0
  %121 = vmatprep.subr.bf16.mxu0 0
  %122 = vmatpush1.bf16.msra.mxu0 0
  %123 = vmatprep.subr.bf16.mxu0 0
  %124 = vmatpush1.bf16.msra.mxu0 0
  %125 = vmatprep.subr.bf16.mxu0 0
  %126 = vmatpush1.bf16.msra.mxu0 0
  %127 = vmatprep.subr.bf16.mxu0 0
  %128 = vmatpush1.bf16.msra.mxu0 0
  %129 = vmatprep.subr.bf16.mxu0 0
  %130 = vmatpush1.bf16.msra.mxu0 0
  %131 = vmatprep.mubr.bf16.mxu0 0
  %132 = vmatmul.mubr.bf16.gmra.mrb[0].mxu0 %v84
  %v133 = vpop.f32.mrb[0].mxu0
  %v134 = vadd.f32 %v45, %v133
  %v135 = vpop.f32.mrb[0].mxu0
  %v136 = vpop.f32.mrb[0].mxu0
  %v137 = vadd.f32 %v45, %v136
  %v138 = vpop.f32.mrb[0].mxu0
  %139 = vmatprep.mubr.bf16.mxu0 0
  %140 = vmatmul.mubr.bf16.gmra.mrb[0].mxu0 %v87
  %v141 = vpop.f32.mrb[0].mxu0
  %v142 = vadd.f32 %v45, %v141
  %v143 = vpop.f32.mrb[0].mxu0
  %v144 = vpop.f32.mrb[0].mxu0
  %v145 = vadd.f32 %v45, %v144
  %v146 = vpop.f32.mrb[0].mxu0
  %147 = vmatprep.mubr.bf16.mxu0 0
  %148 = vmatmul.mubr.bf16.gmra.mrb[0].mxu0 %v90
  %v149 = vpop.f32.mrb[0].mxu0
  %v150 = vadd.f32 %v45, %v149
  %v151 = vpop.f32.mrb[0].mxu0
  %v152 = vpop.f32.mrb[0].mxu0
  %v153 = vadd.f32 %v45, %v152
  %v154 = vpop.f32.mrb[0].mxu0
  %155 = vmatprep.mubr.bf16.mxu0 0
  %156 = vmatmul.mubr.bf16.gmra.mrb[0].mxu0 %v93
  %v157 = vpop.f32.mrb[0].mxu0
  %v158 = vadd.f32 %v45, %v157
  %v159 = vpop.f32.mrb[0].mxu0
  %v160 = vpop.f32.mrb[0].mxu0
  %v161 = vpop.f32.mrb[0].mxu0
  %162 = vdwg.mxu0
  %v163 = vld [vmem:[%s3] sm:$0xf]
  %v164 = vld [vmem:[%s3 + $0x4] sm:$0xf]
  %v165 = vld [vmem:[%s3 + $0x8] sm:$0xf]
  %v166 = vld [vmem:[%s3 + $0xc] sm:$0xf]
  %v167 = vld [vmem:[%s5] sm:$0xff]
  %v168 = vld [vmem:[%s5 + $0x8] sm:$0xff]
  %v169 = vld [vmem:[%s5 + $0x10] sm:$0xff]
  %v170 = vld [vmem:[%s5 + $0x18] sm:$0xff]
  %v171 = vld [vmem:[%s5 + $0x20] sm:$0xff]
  %v172 = vld [vmem:[%s5 + $0x28] sm:$0xff]
  %v173 = vld [vmem:[%s5 + $0x30] sm:$0xff]
  %v174 = vld [vmem:[%s5 + $0x38] sm:$0xff]
  %v175 = vld [vmem:[%s6] sm:$0xf]
  %v176 = vld [vmem:[%s1] sm:$0xff]
  %v177 = vld [vmem:[%s1 + $0x8] sm:$0xff]
  %v178 = vld [vmem:[%s1 + $0x10] sm:$0xff]
  %v179 = vld [vmem:[%s1 + $0x18] sm:$0xff]
  %v180 = vld [vmem:[%s1 + $0x20] sm:$0xff]
  %v181 = vld [vmem:[%s1 + $0x28] sm:$0xff]
  %v186 = vunpack.c.l.b16 %v163
  %v187 = vunpack.c.l.b16 %v164
  %v188 = vunpack.c.l.b16 %v165
  %v189 = vunpack.c.l.b16 %v166
  %v190 = vpack.c.b16 %v187, %v186
  %v191 = vpack.c.b16 %v189, %v188
  %vm194 = vcmask 261120
  %v196 = vsel %vm194, 0, 0
  %198 = vmatprep.subr.bf16.mxu0 0
  %199 = vmatpush1.bf16.msra.mxu0 %v190
  %200 = vmatprep.subr.bf16.mxu0 0
  %201 = vmatpush1.bf16.msra.mxu0 %v191
  %202 = vmatprep.subr.bf16.mxu0 0
  %203 = vmatpush1.bf16.msra.mxu0 0
  %204 = vmatprep.subr.bf16.mxu0 0
  %205 = vmatpush1.bf16.msra.mxu0 0
  %206 = vmatprep.subr.bf16.mxu0 0
  %207 = vmatpush1.bf16.msra.mxu0 0
  %208 = vmatprep.subr.bf16.mxu0 0
  %209 = vmatpush1.bf16.msra.mxu0 0
  %210 = vmatprep.subr.bf16.mxu0 0
  %211 = vmatpush1.bf16.msra.mxu0 0
  %212 = vmatprep.subr.bf16.mxu0 0
  %213 = vmatpush1.bf16.msra.mxu0 0
  %214 = vmatprep.subr.bf16.mxu0 0
  %215 = vmatpush1.bf16.msra.mxu0 0
  %216 = vmatprep.subr.bf16.mxu0 0
  %217 = vmatpush1.bf16.msra.mxu0 0
  %218 = vmatprep.subr.bf16.mxu0 0
  %219 = vmatpush1.bf16.msra.mxu0 0
  %220 = vmatprep.subr.bf16.mxu0 0
  %221 = vmatpush1.bf16.msra.mxu0 0
  %222 = vmatprep.subr.bf16.mxu0 0
  %223 = vmatpush1.bf16.msra.mxu0 0
  %224 = vmatprep.subr.bf16.mxu0 0
  %225 = vmatpush1.bf16.msra.mxu0 0
  %226 = vmatprep.subr.bf16.mxu0 0
  %227 = vmatpush1.bf16.msra.mxu0 0
  %228 = vmatprep.subr.bf16.mxu0 0
  %229 = vmatpush1.bf16.msra.mxu0 0
  %230 = vmatprep.mubr.bf16.mxu0 0
  %231 = vmatmul.mubr.bf16.gmra.mrb[0].mxu0 %v196
  %v232 = vpop.f32.mrb[0].mxu0
  %v233 = vadd.f32 0.0, %v232
  %v234 = vpop.f32.mrb[0].mxu0
  %v235 = vpop.f32.mrb[0].mxu0
  %v236 = vpop.f32.mrb[0].mxu0
  %237 = vdwg.mxu0
  %v238 = vadd.f32 %v134, %v233
  %v239 = vxor.u32 %v238, 2147483648
  %v240 = vmul.f32 %v239, 1.442695
  %v241 = vpow.pop %v240
  %v242 = vadd.f32 %v241, 1.0
  %v243 = vrcp.pop %v242
  %v244 = vmul.f32 1.0, %v243
  %v245 = vtanh.pop %v238
  %v246 = vmul.f32 %v244, 0.0
  %248 = vrot.lane.b32.xlu0 %v245, 64
  %v249 = vpop.permute.xlu0 %248
  %v251 = vmul.f32 %v244, %v249
  %253 = vrot.lane.b32.xlu0 %v251, 32
  %v254 = vpop.permute.xlu0 %253
  %v256 = vadd.f32 %v246, %v254
  %v257 = vtanh.pop %v256
  %259 = vrot.lane.b32.xlu0 %v257, 64
  %v260 = vpop.permute.xlu0 %259
  %v262 = vmul.f32 %v244, %v260
  %v263 = vpack.c.bf16 %v262, %v262
  %v265 = vlaneseq
  %v266 = vshrl.u32 %v265, 7
  %v267 = vsub.s32 0, %v266
  %v268 = vrot.slane %v175, %v267
  %v269 = vlaneseq
  %v270 = vshrl.u32 %v269, 7
  %v271 = vsub.s32 1, %v270
  %v272 = vrot.slane %v175, %v271
  %v273 = vlaneseq
  %v274 = vshrl.u32 %v273, 7
  %v275 = vsub.s32 2, %v274
  %v276 = vrot.slane %v175, %v275
  %v277 = vlaneseq
  %v278 = vshrl.u32 %v277, 7
  %v279 = vsub.s32 3, %v278
  %v280 = vrot.slane %v175, %v279
  %286 = vrot.lane.b32.xlu0 %v263, 32
  %v287 = vpop.permute.xlu0 %286
  %v296 = vunpack.c.l.b16 %v167
  %v297 = vunpack.c.h.b16 %v167
  %v298 = vunpack.c.l.b16 %v168
  %v299 = vunpack.c.h.b16 %v168
  %v300 = vunpack.c.l.b16 %v169
  %v301 = vunpack.c.h.b16 %v169
  %v302 = vunpack.c.l.b16 %v170
  %v303 = vunpack.c.h.b16 %v170
  %v304 = vunpack.c.l.b16 %v171
  %v305 = vunpack.c.h.b16 %v171
  %v306 = vunpack.c.l.b16 %v172
  %v307 = vunpack.c.h.b16 %v172
  %v308 = vunpack.c.l.b16 %v173
  %v309 = vunpack.c.h.b16 %v173
  %v310 = vunpack.c.l.b16 %v174
  %v311 = vunpack.c.h.b16 %v174
  %v312 = vpack.c.b16 %v300, %v296
  %v313 = vpack.c.b16 %v301, %v297
  %v314 = vpack.c.b16 %v302, %v298
  %v315 = vpack.c.b16 %v303, %v299
  %v316 = vpack.c.b16 %v308, %v304
  %v317 = vpack.c.b16 %v309, %v305
  %v318 = vpack.c.b16 %v310, %v306
  %v319 = vpack.c.b16 %v311, %v307
  %v329 = vsel %vm194, %v287, 0
  %331 = vmatprep.subr.bf16.mxu0 %v313
  %332 = vmatpush1.bf16.msra.mxu0 %v312
  %333 = vmatprep.subr.bf16.mxu0 %v317
  %334 = vmatpush1.bf16.msra.mxu0 %v316
  %335 = vmatprep.subr.bf16.mxu0 0
  %336 = vmatpush1.bf16.msra.mxu0 0
  %337 = vmatprep.subr.bf16.mxu0 0
  %338 = vmatpush1.bf16.msra.mxu0 0
  %339 = vmatprep.subr.bf16.mxu0 0
  %340 = vmatpush1.bf16.msra.mxu0 0
  %341 = vmatprep.subr.bf16.mxu0 0
  %342 = vmatpush1.bf16.msra.mxu0 0
  %343 = vmatprep.subr.bf16.mxu0 0
  %344 = vmatpush1.bf16.msra.mxu0 0
  %345 = vmatprep.subr.bf16.mxu0 0
  %346 = vmatpush1.bf16.msra.mxu0 0
  %347 = vmatprep.subr.bf16.mxu0 0
  %348 = vmatpush1.bf16.msra.mxu0 0
  %349 = vmatprep.subr.bf16.mxu0 0
  %350 = vmatpush1.bf16.msra.mxu0 0
  %351 = vmatprep.subr.bf16.mxu0 0
  %352 = vmatpush1.bf16.msra.mxu0 0
  %353 = vmatprep.subr.bf16.mxu0 0
  %354 = vmatpush1.bf16.msra.mxu0 0
  %355 = vmatprep.subr.bf16.mxu0 0
  %356 = vmatpush1.bf16.msra.mxu0 0
  %357 = vmatprep.subr.bf16.mxu0 0
  %358 = vmatpush1.bf16.msra.mxu0 0
  %359 = vmatprep.subr.bf16.mxu0 0
  %360 = vmatpush1.bf16.msra.mxu0 0
  %361 = vmatprep.subr.bf16.mxu0 0
  %362 = vmatpush1.bf16.msra.mxu0 0
  %363 = vmatprep.mubr.bf16.mxu0 0
  %364 = vmatmul.mubr.bf16.gmra.mrb[0].mxu0 %v329
  %v365 = vpop.f32.mrb[0].mxu0
  %v366 = vadd.f32 %v268, %v365
  %v367 = vpop.f32.mrb[0].mxu0
  %v368 = vadd.f32 %v272, %v367
  %v369 = vpop.f32.mrb[0].mxu0
  %v370 = vpop.f32.mrb[0].mxu0
  %371 = vdwg.mxu0
  %372 = vmatprep.subr.bf16.mxu0 %v315
  %373 = vmatpush1.bf16.msra.mxu0 %v314
  %374 = vmatprep.subr.bf16.mxu0 %v319
  %375 = vmatpush1.bf16.msra.mxu0 %v318
  %376 = vmatprep.subr.bf16.mxu0 0
  %377 = vmatpush1.bf16.msra.mxu0 0
  %378 = vmatprep.subr.bf16.mxu0 0
  %379 = vmatpush1.bf16.msra.mxu0 0
  %380 = vmatprep.subr.bf16.mxu0 0
  %381 = vmatpush1.bf16.msra.mxu0 0
  %382 = vmatprep.subr.bf16.mxu0 0
  %383 = vmatpush1.bf16.msra.mxu0 0
  %384 = vmatprep.subr.bf16.mxu0 0
  %385 = vmatpush1.bf16.msra.mxu0 0
  %386 = vmatprep.subr.bf16.mxu0 0
  %387 = vmatpush1.bf16.msra.mxu0 0
  %388 = vmatprep.subr.bf16.mxu0 0
  %389 = vmatpush1.bf16.msra.mxu0 0
  %390 = vmatprep.subr.bf16.mxu0 0
  %391 = vmatpush1.bf16.msra.mxu0 0
  %392 = vmatprep.subr.bf16.mxu0 0
  %393 = vmatpush1.bf16.msra.mxu0 0
  %394 = vmatprep.subr.bf16.mxu0 0
  %395 = vmatpush1.bf16.msra.mxu0 0
  %396 = vmatprep.subr.bf16.mxu0 0
  %397 = vmatpush1.bf16.msra.mxu0 0
  %398 = vmatprep.subr.bf16.mxu0 0
  %399 = vmatpush1.bf16.msra.mxu0 0
  %400 = vmatprep.subr.bf16.mxu0 0
  %401 = vmatpush1.bf16.msra.mxu0 0
  %402 = vmatprep.subr.bf16.mxu0 0
  %403 = vmatpush1.bf16.msra.mxu0 0
  %404 = vmatprep.mubr.bf16.mxu0 0
  %405 = vmatmul.mubr.bf16.gmra.mrb[0].mxu0 %v329
  %v406 = vpop.f32.mrb[0].mxu0
  %v407 = vadd.f32 %v276, %v406
  %v408 = vpop.f32.mrb[0].mxu0
  %v409 = vadd.f32 %v280, %v408
  %v410 = vpop.f32.mrb[0].mxu0
  %v411 = vpop.f32.mrb[0].mxu0
  %412 = vdwg.mxu0
  %413 = vst [vmem:[%s7] sm:$0xff] %v366
  %414 = vst [vmem:[%s7 + $0x8] sm:$0xff] %v368
  %415 = vst [vmem:[%s7 + $0x10] sm:$0xff] %v407
  %416 = vst [vmem:[%s7 + $0x18] sm:$0xff] %v409
  %418 = vrot.lane.b32.xlu0 %v176, 96
  %v419 = vpop.permute.xlu0 %418
  %v421 = vmul.f32 %v262, %v419
  %422 = vrot.lane.b32.xlu0 %v176, 32
  %v423 = vpop.permute.xlu0 %422
  %v425 = vmul.f32 %v256, %v423
  %v426 = vpack.c.bf16 %v421, %v421
  %428 = vrot.lane.b32.xlu0 %v426, 32
  %v429 = vpop.permute.xlu0 %428
  %v431 = vsel %vm194, %v429, 0
  %433 = vmatprep.subr.bf16.mxu0 0
  %434 = vmatpush1.bf16.msra.mxu0 %v190
  %435 = vmatprep.subr.bf16.mxu0 0
  %436 = vmatpush1.bf16.msra.mxu0 %v191
  %437 = vmatprep.subr.bf16.mxu0 0
  %438 = vmatpush1.bf16.msra.mxu0 0
  %439 = vmatprep.subr.bf16.mxu0 0
  %440 = vmatpush1.bf16.msra.mxu0 0
  %441 = vmatprep.subr.bf16.mxu0 0
  %442 = vmatpush1.bf16.msra.mxu0 0
  %443 = vmatprep.subr.bf16.mxu0 0
  %444 = vmatpush1.bf16.msra.mxu0 0
  %445 = vmatprep.subr.bf16.mxu0 0
  %446 = vmatpush1.bf16.msra.mxu0 0
  %447 = vmatprep.subr.bf16.mxu0 0
  %448 = vmatpush1.bf16.msra.mxu0 0
  %449 = vmatprep.subr.bf16.mxu0 0
  %450 = vmatpush1.bf16.msra.mxu0 0
  %451 = vmatprep.subr.bf16.mxu0 0
  %452 = vmatpush1.bf16.msra.mxu0 0
  %453 = vmatprep.subr.bf16.mxu0 0
  %454 = vmatpush1.bf16.msra.mxu0 0
  %455 = vmatprep.subr.bf16.mxu0 0
  %456 = vmatpush1.bf16.msra.mxu0 0
  %457 = vmatprep.subr.bf16.mxu0 0
  %458 = vmatpush1.bf16.msra.mxu0 0
  %459 = vmatprep.subr.bf16.mxu0 0
  %460 = vmatpush1.bf16.msra.mxu0 0
  %461 = vmatprep.subr.bf16.mxu0 0
  %462 = vmatpush1.bf16.msra.mxu0 0
  %463 = vmatprep.subr.bf16.mxu0 0
  %464 = vmatpush1.bf16.msra.mxu0 0
  %465 = vmatprep.mubr.bf16.mxu0 0
  %466 = vmatmul.mubr.bf16.gmra.mrb[0].mxu0 %v431
  %v467 = vpop.f32.mrb[0].mxu0
  %v468 = vadd.f32 0.0, %v467
  %v469 = vpop.f32.mrb[0].mxu0
  %v470 = vpop.f32.mrb[0].mxu0
  %v471 = vpop.f32.mrb[0].mxu0
  %472 = vdwg.mxu0
  %v473 = vadd.f32 %v137, %v468
  %v474 = vxor.u32 %v473, 2147483648
  %v475 = vmul.f32 %v474, 1.442695
  %v476 = vpow.pop %v475
  %v477 = vadd.f32 %v476, 1.0
  %v478 = vrcp.pop %v477
  %v479 = vmul.f32 1.0, %v478
  %v480 = vtanh.pop %v473
  %v481 = vmul.f32 %v479, %v425
  %483 = vrot.lane.b32.xlu0 %v480, 64
  %v484 = vpop.permute.xlu0 %483
  %v486 = vmul.f32 %v479, %v484
  %488 = vrot.lane.b32.xlu0 %v486, 32
  %v489 = vpop.permute.xlu0 %488
  %v491 = vadd.f32 %v481, %v489
  %v492 = vtanh.pop %v491
  %494 = vrot.lane.b32.xlu0 %v492, 64
  %v495 = vpop.permute.xlu0 %494
  %v497 = vmul.f32 %v479, %v495
  %v498 = vpack.c.bf16 %v497, %v497
  %500 = vrot.lane.b32.xlu0 %v498, 32
  %v501 = vpop.permute.xlu0 %500
  %v503 = vsel %vm194, %v501, 0
  %505 = vmatprep.subr.bf16.mxu0 %v313
  %506 = vmatpush1.bf16.msra.mxu0 %v312
  %507 = vmatprep.subr.bf16.mxu0 %v317
  %508 = vmatpush1.bf16.msra.mxu0 %v316
  %509 = vmatprep.subr.bf16.mxu0 0
  %510 = vmatpush1.bf16.msra.mxu0 0
  %511 = vmatprep.subr.bf16.mxu0 0
  %512 = vmatpush1.bf16.msra.mxu0 0
  %513 = vmatprep.subr.bf16.mxu0 0
  %514 = vmatpush1.bf16.msra.mxu0 0
  %515 = vmatprep.subr.bf16.mxu0 0
  %516 = vmatpush1.bf16.msra.mxu0 0
  %517 = vmatprep.subr.bf16.mxu0 0
  %518 = vmatpush1.bf16.msra.mxu0 0
  %519 = vmatprep.subr.bf16.mxu0 0
  %520 = vmatpush1.bf16.msra.mxu0 0
  %521 = vmatprep.subr.bf16.mxu0 0
  %522 = vmatpush1.bf16.msra.mxu0 0
  %523 = vmatprep.subr.bf16.mxu0 0
  %524 = vmatpush1.bf16.msra.mxu0 0
  %525 = vmatprep.subr.bf16.mxu0 0
  %526 = vmatpush1.bf16.msra.mxu0 0
  %527 = vmatprep.subr.bf16.mxu0 0
  %528 = vmatpush1.bf16.msra.mxu0 0
  %529 = vmatprep.subr.bf16.mxu0 0
  %530 = vmatpush1.bf16.msra.mxu0 0
  %531 = vmatprep.subr.bf16.mxu0 0
  %532 = vmatpush1.bf16.msra.mxu0 0
  %533 = vmatprep.subr.bf16.mxu0 0
  %534 = vmatpush1.bf16.msra.mxu0 0
  %535 = vmatprep.subr.bf16.mxu0 0
  %536 = vmatpush1.bf16.msra.mxu0 0
  %537 = vmatprep.mubr.bf16.mxu0 0
  %538 = vmatmul.mubr.bf16.gmra.mrb[0].mxu0 %v503
  %v539 = vpop.f32.mrb[0].mxu0
  %v540 = vadd.f32 %v268, %v539
  %v541 = vpop.f32.mrb[0].mxu0
  %v542 = vadd.f32 %v272, %v541
  %v543 = vpop.f32.mrb[0].mxu0
  %v544 = vpop.f32.mrb[0].mxu0
  %545 = vdwg.mxu0
  %546 = vmatprep.subr.bf16.mxu0 %v315
  %547 = vmatpush1.bf16.msra.mxu0 %v314
  %548 = vmatprep.subr.bf16.mxu0 %v319
  %549 = vmatpush1.bf16.msra.mxu0 %v318
  %550 = vmatprep.subr.bf16.mxu0 0
  %551 = vmatpush1.bf16.msra.mxu0 0
  %552 = vmatprep.subr.bf16.mxu0 0
  %553 = vmatpush1.bf16.msra.mxu0 0
  %554 = vmatprep.subr.bf16.mxu0 0
  %555 = vmatpush1.bf16.msra.mxu0 0
  %556 = vmatprep.subr.bf16.mxu0 0
  %557 = vmatpush1.bf16.msra.mxu0 0
  %558 = vmatprep.subr.bf16.mxu0 0
  %559 = vmatpush1.bf16.msra.mxu0 0
  %560 = vmatprep.subr.bf16.mxu0 0
  %561 = vmatpush1.bf16.msra.mxu0 0
  %562 = vmatprep.subr.bf16.mxu0 0
  %563 = vmatpush1.bf16.msra.mxu0 0
  %564 = vmatprep.subr.bf16.mxu0 0
  %565 = vmatpush1.bf16.msra.mxu0 0
  %566 = vmatprep.subr.bf16.mxu0 0
  %567 = vmatpush1.bf16.msra.mxu0 0
  %568 = vmatprep.subr.bf16.mxu0 0
  %569 = vmatpush1.bf16.msra.mxu0 0
  %570 = vmatprep.subr.bf16.mxu0 0
  %571 = vmatpush1.bf16.msra.mxu0 0
  %572 = vmatprep.subr.bf16.mxu0 0
  %573 = vmatpush1.bf16.msra.mxu0 0
  %574 = vmatprep.subr.bf16.mxu0 0
  %575 = vmatpush1.bf16.msra.mxu0 0
  %576 = vmatprep.subr.bf16.mxu0 0
  %577 = vmatpush1.bf16.msra.mxu0 0
  %578 = vmatprep.mubr.bf16.mxu0 0
  %579 = vmatmul.mubr.bf16.gmra.mrb[0].mxu0 %v503
  %v580 = vpop.f32.mrb[0].mxu0
  %v581 = vadd.f32 %v276, %v580
  %v582 = vpop.f32.mrb[0].mxu0
  %v583 = vadd.f32 %v280, %v582
  %v584 = vpop.f32.mrb[0].mxu0
  %v585 = vpop.f32.mrb[0].mxu0
  %586 = vdwg.mxu0
  %s587 = scalar_lea.vmem %s7, 32
  %588 = vst [vmem:[%s587] sm:$0xff] %v540
  %589 = vst [vmem:[%s587 + $0x8] sm:$0xff] %v542
  %590 = vst [vmem:[%s587 + $0x10] sm:$0xff] %v581
  %591 = vst [vmem:[%s587 + $0x18] sm:$0xff] %v583
  %593 = vrot.lane.b32.xlu0 %v177, 96
  %v594 = vpop.permute.xlu0 %593
  %v596 = vmul.f32 %v497, %v594
  %597 = vrot.lane.b32.xlu0 %v177, 32
  %v598 = vpop.permute.xlu0 %597
  %v600 = vmul.f32 %v491, %v598
  %v601 = vpack.c.bf16 %v596, %v596
  %603 = vrot.lane.b32.xlu0 %v601, 32
  %v604 = vpop.permute.xlu0 %603
  %v606 = vsel %vm194, %v604, 0
  %608 = vmatprep.subr.bf16.mxu0 0
  %609 = vmatpush1.bf16.msra.mxu0 %v190
  %610 = vmatprep.subr.bf16.mxu0 0
  %611 = vmatpush1.bf16.msra.mxu0 %v191
  %612 = vmatprep.subr.bf16.mxu0 0
  %613 = vmatpush1.bf16.msra.mxu0 0
  %614 = vmatprep.subr.bf16.mxu0 0
  %615 = vmatpush1.bf16.msra.mxu0 0
  %616 = vmatprep.subr.bf16.mxu0 0
  %617 = vmatpush1.bf16.msra.mxu0 0
  %618 = vmatprep.subr.bf16.mxu0 0
  %619 = vmatpush1.bf16.msra.mxu0 0
  %620 = vmatprep.subr.bf16.mxu0 0
  %621 = vmatpush1.bf16.msra.mxu0 0
  %622 = vmatprep.subr.bf16.mxu0 0
  %623 = vmatpush1.bf16.msra.mxu0 0
  %624 = vmatprep.subr.bf16.mxu0 0
  %625 = vmatpush1.bf16.msra.mxu0 0
  %626 = vmatprep.subr.bf16.mxu0 0
  %627 = vmatpush1.bf16.msra.mxu0 0
  %628 = vmatprep.subr.bf16.mxu0 0
  %629 = vmatpush1.bf16.msra.mxu0 0
  %630 = vmatprep.subr.bf16.mxu0 0
  %631 = vmatpush1.bf16.msra.mxu0 0
  %632 = vmatprep.subr.bf16.mxu0 0
  %633 = vmatpush1.bf16.msra.mxu0 0
  %634 = vmatprep.subr.bf16.mxu0 0
  %635 = vmatpush1.bf16.msra.mxu0 0
  %636 = vmatprep.subr.bf16.mxu0 0
  %637 = vmatpush1.bf16.msra.mxu0 0
  %638 = vmatprep.subr.bf16.mxu0 0
  %639 = vmatpush1.bf16.msra.mxu0 0
  %640 = vmatprep.mubr.bf16.mxu0 0
  %641 = vmatmul.mubr.bf16.gmra.mrb[0].mxu0 %v606
  %v642 = vpop.f32.mrb[0].mxu0
  %v643 = vadd.f32 0.0, %v642
  %v644 = vpop.f32.mrb[0].mxu0
  %v645 = vpop.f32.mrb[0].mxu0
  %v646 = vpop.f32.mrb[0].mxu0
  %647 = vdwg.mxu0
  %v648 = vadd.f32 %v142, %v643
  %v649 = vxor.u32 %v648, 2147483648
  %v650 = vmul.f32 %v649, 1.442695
  %v651 = vpow.pop %v650
  %v652 = vadd.f32 %v651, 1.0
  %v653 = vrcp.pop %v652
  %v654 = vmul.f32 1.0, %v653
  %v655 = vtanh.pop %v648
  %v656 = vmul.f32 %v654, %v600
  %658 = vrot.lane.b32.xlu0 %v655, 64
  %v659 = vpop.permute.xlu0 %658
  %v661 = vmul.f32 %v654, %v659
  %663 = vrot.lane.b32.xlu0 %v661, 32
  %v664 = vpop.permute.xlu0 %663
  %v666 = vadd.f32 %v656, %v664
  %v667 = vtanh.pop %v666
  %669 = vrot.lane.b32.xlu0 %v667, 64
  %v670 = vpop.permute.xlu0 %669
  %v672 = vmul.f32 %v654, %v670
  %v673 = vpack.c.bf16 %v672, %v672
  %675 = vrot.lane.b32.xlu0 %v673, 32
  %v676 = vpop.permute.xlu0 %675
  %v678 = vsel %vm194, %v676, 0
  %680 = vmatprep.subr.bf16.mxu0 %v313
  %681 = vmatpush1.bf16.msra.mxu0 %v312
  %682 = vmatprep.subr.bf16.mxu0 %v317
  %683 = vmatpush1.bf16.msra.mxu0 %v316
  %684 = vmatprep.subr.bf16.mxu0 0
  %685 = vmatpush1.bf16.msra.mxu0 0
  %686 = vmatprep.subr.bf16.mxu0 0
  %687 = vmatpush1.bf16.msra.mxu0 0
  %688 = vmatprep.subr.bf16.mxu0 0
  %689 = vmatpush1.bf16.msra.mxu0 0
  %690 = vmatprep.subr.bf16.mxu0 0
  %691 = vmatpush1.bf16.msra.mxu0 0
  %692 = vmatprep.subr.bf16.mxu0 0
  %693 = vmatpush1.bf16.msra.mxu0 0
  %694 = vmatprep.subr.bf16.mxu0 0
  %695 = vmatpush1.bf16.msra.mxu0 0
  %696 = vmatprep.subr.bf16.mxu0 0
  %697 = vmatpush1.bf16.msra.mxu0 0
  %698 = vmatprep.subr.bf16.mxu0 0
  %699 = vmatpush1.bf16.msra.mxu0 0
  %700 = vmatprep.subr.bf16.mxu0 0
  %701 = vmatpush1.bf16.msra.mxu0 0
  %702 = vmatprep.subr.bf16.mxu0 0
  %703 = vmatpush1.bf16.msra.mxu0 0
  %704 = vmatprep.subr.bf16.mxu0 0
  %705 = vmatpush1.bf16.msra.mxu0 0
  %706 = vmatprep.subr.bf16.mxu0 0
  %707 = vmatpush1.bf16.msra.mxu0 0
  %708 = vmatprep.subr.bf16.mxu0 0
  %709 = vmatpush1.bf16.msra.mxu0 0
  %710 = vmatprep.subr.bf16.mxu0 0
  %711 = vmatpush1.bf16.msra.mxu0 0
  %712 = vmatprep.mubr.bf16.mxu0 0
  %713 = vmatmul.mubr.bf16.gmra.mrb[0].mxu0 %v678
  %v714 = vpop.f32.mrb[0].mxu0
  %v715 = vadd.f32 %v268, %v714
  %v716 = vpop.f32.mrb[0].mxu0
  %v717 = vadd.f32 %v272, %v716
  %v718 = vpop.f32.mrb[0].mxu0
  %v719 = vpop.f32.mrb[0].mxu0
  %720 = vdwg.mxu0
  %721 = vmatprep.subr.bf16.mxu0 %v315
  %722 = vmatpush1.bf16.msra.mxu0 %v314
  %723 = vmatprep.subr.bf16.mxu0 %v319
  %724 = vmatpush1.bf16.msra.mxu0 %v318
  %725 = vmatprep.subr.bf16.mxu0 0
  %726 = vmatpush1.bf16.msra.mxu0 0
  %727 = vmatprep.subr.bf16.mxu0 0
  %728 = vmatpush1.bf16.msra.mxu0 0
  %729 = vmatprep.subr.bf16.mxu0 0
  %730 = vmatpush1.bf16.msra.mxu0 0
  %731 = vmatprep.subr.bf16.mxu0 0
  %732 = vmatpush1.bf16.msra.mxu0 0
  %733 = vmatprep.subr.bf16.mxu0 0
  %734 = vmatpush1.bf16.msra.mxu0 0
  %735 = vmatprep.subr.bf16.mxu0 0
  %736 = vmatpush1.bf16.msra.mxu0 0
  %737 = vmatprep.subr.bf16.mxu0 0
  %738 = vmatpush1.bf16.msra.mxu0 0
  %739 = vmatprep.subr.bf16.mxu0 0
  %740 = vmatpush1.bf16.msra.mxu0 0
  %741 = vmatprep.subr.bf16.mxu0 0
  %742 = vmatpush1.bf16.msra.mxu0 0
  %743 = vmatprep.subr.bf16.mxu0 0
  %744 = vmatpush1.bf16.msra.mxu0 0
  %745 = vmatprep.subr.bf16.mxu0 0
  %746 = vmatpush1.bf16.msra.mxu0 0
  %747 = vmatprep.subr.bf16.mxu0 0
  %748 = vmatpush1.bf16.msra.mxu0 0
  %749 = vmatprep.subr.bf16.mxu0 0
  %750 = vmatpush1.bf16.msra.mxu0 0
  %751 = vmatprep.subr.bf16.mxu0 0
  %752 = vmatpush1.bf16.msra.mxu0 0
  %753 = vmatprep.mubr.bf16.mxu0 0
  %754 = vmatmul.mubr.bf16.gmra.mrb[0].mxu0 %v678
  %v755 = vpop.f32.mrb[0].mxu0
  %v756 = vadd.f32 %v276, %v755
  %v757 = vpop.f32.mrb[0].mxu0
  %v758 = vadd.f32 %v280, %v757
  %v759 = vpop.f32.mrb[0].mxu0
  %v760 = vpop.f32.mrb[0].mxu0
  %761 = vdwg.mxu0
  %s762 = scalar_lea.vmem %s7, 64
  %763 = vst [vmem:[%s762] sm:$0xff] %v715
  %764 = vst [vmem:[%s762 + $0x8] sm:$0xff] %v717
  %765 = vst [vmem:[%s762 + $0x10] sm:$0xff] %v756
  %766 = vst [vmem:[%s762 + $0x18] sm:$0xff] %v758
  %768 = vrot.lane.b32.xlu0 %v178, 96
  %v769 = vpop.permute.xlu0 %768
  %v771 = vmul.f32 %v672, %v769
  %772 = vrot.lane.b32.xlu0 %v178, 32
  %v773 = vpop.permute.xlu0 %772
  %v775 = vmul.f32 %v666, %v773
  %v776 = vpack.c.bf16 %v771, %v771
  %778 = vrot.lane.b32.xlu0 %v776, 32
  %v779 = vpop.permute.xlu0 %778
  %v781 = vsel %vm194, %v779, 0
  %783 = vmatprep.subr.bf16.mxu0 0
  %784 = vmatpush1.bf16.msra.mxu0 %v190
  %785 = vmatprep.subr.bf16.mxu0 0
  %786 = vmatpush1.bf16.msra.mxu0 %v191
  %787 = vmatprep.subr.bf16.mxu0 0
  %788 = vmatpush1.bf16.msra.mxu0 0
  %789 = vmatprep.subr.bf16.mxu0 0
  %790 = vmatpush1.bf16.msra.mxu0 0
  %791 = vmatprep.subr.bf16.mxu0 0
  %792 = vmatpush1.bf16.msra.mxu0 0
  %793 = vmatprep.subr.bf16.mxu0 0
  %794 = vmatpush1.bf16.msra.mxu0 0
  %795 = vmatprep.subr.bf16.mxu0 0
  %796 = vmatpush1.bf16.msra.mxu0 0
  %797 = vmatprep.subr.bf16.mxu0 0
  %798 = vmatpush1.bf16.msra.mxu0 0
  %799 = vmatprep.subr.bf16.mxu0 0
  %800 = vmatpush1.bf16.msra.mxu0 0
  %801 = vmatprep.subr.bf16.mxu0 0
  %802 = vmatpush1.bf16.msra.mxu0 0
  %803 = vmatprep.subr.bf16.mxu0 0
  %804 = vmatpush1.bf16.msra.mxu0 0
  %805 = vmatprep.subr.bf16.mxu0 0
  %806 = vmatpush1.bf16.msra.mxu0 0
  %807 = vmatprep.subr.bf16.mxu0 0
  %808 = vmatpush1.bf16.msra.mxu0 0
  %809 = vmatprep.subr.bf16.mxu0 0
  %810 = vmatpush1.bf16.msra.mxu0 0
  %811 = vmatprep.subr.bf16.mxu0 0
  %812 = vmatpush1.bf16.msra.mxu0 0
  %813 = vmatprep.subr.bf16.mxu0 0
  %814 = vmatpush1.bf16.msra.mxu0 0
  %815 = vmatprep.mubr.bf16.mxu0 0
  %816 = vmatmul.mubr.bf16.gmra.mrb[0].mxu0 %v781
  %v817 = vpop.f32.mrb[0].mxu0
  %v818 = vadd.f32 0.0, %v817
  %v819 = vpop.f32.mrb[0].mxu0
  %v820 = vpop.f32.mrb[0].mxu0
  %v821 = vpop.f32.mrb[0].mxu0
  %822 = vdwg.mxu0
  %v823 = vadd.f32 %v145, %v818
  %v824 = vxor.u32 %v823, 2147483648
  %v825 = vmul.f32 %v824, 1.442695
  %v826 = vpow.pop %v825
  %v827 = vadd.f32 %v826, 1.0
  %v828 = vrcp.pop %v827
  %v829 = vmul.f32 1.0, %v828
  %v830 = vtanh.pop %v823
  %v831 = vmul.f32 %v829, %v775
  %833 = vrot.lane.b32.xlu0 %v830, 64
  %v834 = vpop.permute.xlu0 %833
  %v836 = vmul.f32 %v829, %v834
  %838 = vrot.lane.b32.xlu0 %v836, 32
  %v839 = vpop.permute.xlu0 %838
  %v841 = vadd.f32 %v831, %v839
  %v842 = vtanh.pop %v841
  %844 = vrot.lane.b32.xlu0 %v842, 64
  %v845 = vpop.permute.xlu0 %844
  %v847 = vmul.f32 %v829, %v845
  %v848 = vpack.c.bf16 %v847, %v847
  %850 = vrot.lane.b32.xlu0 %v848, 32
  %v851 = vpop.permute.xlu0 %850
  %v853 = vsel %vm194, %v851, 0
  %855 = vmatprep.subr.bf16.mxu0 %v313
  %856 = vmatpush1.bf16.msra.mxu0 %v312
  %857 = vmatprep.subr.bf16.mxu0 %v317
  %858 = vmatpush1.bf16.msra.mxu0 %v316
  %859 = vmatprep.subr.bf16.mxu0 0
  %860 = vmatpush1.bf16.msra.mxu0 0
  %861 = vmatprep.subr.bf16.mxu0 0
  %862 = vmatpush1.bf16.msra.mxu0 0
  %863 = vmatprep.subr.bf16.mxu0 0
  %864 = vmatpush1.bf16.msra.mxu0 0
  %865 = vmatprep.subr.bf16.mxu0 0
  %866 = vmatpush1.bf16.msra.mxu0 0
  %867 = vmatprep.subr.bf16.mxu0 0
  %868 = vmatpush1.bf16.msra.mxu0 0
  %869 = vmatprep.subr.bf16.mxu0 0
  %870 = vmatpush1.bf16.msra.mxu0 0
  %871 = vmatprep.subr.bf16.mxu0 0
  %872 = vmatpush1.bf16.msra.mxu0 0
  %873 = vmatprep.subr.bf16.mxu0 0
  %874 = vmatpush1.bf16.msra.mxu0 0
  %875 = vmatprep.subr.bf16.mxu0 0
  %876 = vmatpush1.bf16.msra.mxu0 0
  %877 = vmatprep.subr.bf16.mxu0 0
  %878 = vmatpush1.bf16.msra.mxu0 0
  %879 = vmatprep.subr.bf16.mxu0 0
  %880 = vmatpush1.bf16.msra.mxu0 0
  %881 = vmatprep.subr.bf16.mxu0 0
  %882 = vmatpush1.bf16.msra.mxu0 0
  %883 = vmatprep.subr.bf16.mxu0 0
  %884 = vmatpush1.bf16.msra.mxu0 0
  %885 = vmatprep.subr.bf16.mxu0 0
  %886 = vmatpush1.bf16.msra.mxu0 0
  %887 = vmatprep.mubr.bf16.mxu0 0
  %888 = vmatmul.mubr.bf16.gmra.mrb[0].mxu0 %v853
  %v889 = vpop.f32.mrb[0].mxu0
  %v890 = vadd.f32 %v268, %v889
  %v891 = vpop.f32.mrb[0].mxu0
  %v892 = vadd.f32 %v272, %v891
  %v893 = vpop.f32.mrb[0].mxu0
  %v894 = vpop.f32.mrb[0].mxu0
  %895 = vdwg.mxu0
  %896 = vmatprep.subr.bf16.mxu0 %v315
  %897 = vmatpush1.bf16.msra.mxu0 %v314
  %898 = vmatprep.subr.bf16.mxu0 %v319
  %899 = vmatpush1.bf16.msra.mxu0 %v318
  %900 = vmatprep.subr.bf16.mxu0 0
  %901 = vmatpush1.bf16.msra.mxu0 0
  %902 = vmatprep.subr.bf16.mxu0 0
  %903 = vmatpush1.bf16.msra.mxu0 0
  %904 = vmatprep.subr.bf16.mxu0 0
  %905 = vmatpush1.bf16.msra.mxu0 0
  %906 = vmatprep.subr.bf16.mxu0 0
  %907 = vmatpush1.bf16.msra.mxu0 0
  %908 = vmatprep.subr.bf16.mxu0 0
  %909 = vmatpush1.bf16.msra.mxu0 0
  %910 = vmatprep.subr.bf16.mxu0 0
  %911 = vmatpush1.bf16.msra.mxu0 0
  %912 = vmatprep.subr.bf16.mxu0 0
  %913 = vmatpush1.bf16.msra.mxu0 0
  %914 = vmatprep.subr.bf16.mxu0 0
  %915 = vmatpush1.bf16.msra.mxu0 0
  %916 = vmatprep.subr.bf16.mxu0 0
  %917 = vmatpush1.bf16.msra.mxu0 0
  %918 = vmatprep.subr.bf16.mxu0 0
  %919 = vmatpush1.bf16.msra.mxu0 0
  %920 = vmatprep.subr.bf16.mxu0 0
  %921 = vmatpush1.bf16.msra.mxu0 0
  %922 = vmatprep.subr.bf16.mxu0 0
  %923 = vmatpush1.bf16.msra.mxu0 0
  %924 = vmatprep.subr.bf16.mxu0 0
  %925 = vmatpush1.bf16.msra.mxu0 0
  %926 = vmatprep.subr.bf16.mxu0 0
  %927 = vmatpush1.bf16.msra.mxu0 0
  %928 = vmatprep.mubr.bf16.mxu0 0
  %929 = vmatmul.mubr.bf16.gmra.mrb[0].mxu0 %v853
  %v930 = vpop.f32.mrb[0].mxu0
  %v931 = vadd.f32 %v276, %v930
  %v932 = vpop.f32.mrb[0].mxu0
  %v933 = vadd.f32 %v280, %v932
  %v934 = vpop.f32.mrb[0].mxu0
  %v935 = vpop.f32.mrb[0].mxu0
  %936 = vdwg.mxu0
  %s937 = scalar_lea.vmem %s7, 96
  %938 = vst [vmem:[%s937] sm:$0xff] %v890
  %939 = vst [vmem:[%s937 + $0x8] sm:$0xff] %v892
  %940 = vst [vmem:[%s937 + $0x10] sm:$0xff] %v931
  %941 = vst [vmem:[%s937 + $0x18] sm:$0xff] %v933
  %943 = vrot.lane.b32.xlu0 %v179, 96
  %v944 = vpop.permute.xlu0 %943
  %v946 = vmul.f32 %v847, %v944
  %947 = vrot.lane.b32.xlu0 %v179, 32
  %v948 = vpop.permute.xlu0 %947
  %v950 = vmul.f32 %v841, %v948
  %v951 = vpack.c.bf16 %v946, %v946
  %953 = vrot.lane.b32.xlu0 %v951, 32
  %v954 = vpop.permute.xlu0 %953
  %v956 = vsel %vm194, %v954, 0
  %958 = vmatprep.subr.bf16.mxu0 0
  %959 = vmatpush1.bf16.msra.mxu0 %v190
  %960 = vmatprep.subr.bf16.mxu0 0
  %961 = vmatpush1.bf16.msra.mxu0 %v191
  %962 = vmatprep.subr.bf16.mxu0 0
  %963 = vmatpush1.bf16.msra.mxu0 0
  %964 = vmatprep.subr.bf16.mxu0 0
  %965 = vmatpush1.bf16.msra.mxu0 0
  %966 = vmatprep.subr.bf16.mxu0 0
  %967 = vmatpush1.bf16.msra.mxu0 0
  %968 = vmatprep.subr.bf16.mxu0 0
  %969 = vmatpush1.bf16.msra.mxu0 0
  %970 = vmatprep.subr.bf16.mxu0 0
  %971 = vmatpush1.bf16.msra.mxu0 0
  %972 = vmatprep.subr.bf16.mxu0 0
  %973 = vmatpush1.bf16.msra.mxu0 0
  %974 = vmatprep.subr.bf16.mxu0 0
  %975 = vmatpush1.bf16.msra.mxu0 0
  %976 = vmatprep.subr.bf16.mxu0 0
  %977 = vmatpush1.bf16.msra.mxu0 0
  %978 = vmatprep.subr.bf16.mxu0 0
  %979 = vmatpush1.bf16.msra.mxu0 0
  %980 = vmatprep.subr.bf16.mxu0 0
  %981 = vmatpush1.bf16.msra.mxu0 0
  %982 = vmatprep.subr.bf16.mxu0 0
  %983 = vmatpush1.bf16.msra.mxu0 0
  %984 = vmatprep.subr.bf16.mxu0 0
  %985 = vmatpush1.bf16.msra.mxu0 0
  %986 = vmatprep.subr.bf16.mxu0 0
  %987 = vmatpush1.bf16.msra.mxu0 0
  %988 = vmatprep.subr.bf16.mxu0 0
  %989 = vmatpush1.bf16.msra.mxu0 0
  %990 = vmatprep.mubr.bf16.mxu0 0
  %991 = vmatmul.mubr.bf16.gmra.mrb[0].mxu0 %v956
  %v992 = vpop.f32.mrb[0].mxu0
  %v993 = vadd.f32 0.0, %v992
  %v994 = vpop.f32.mrb[0].mxu0
  %v995 = vpop.f32.mrb[0].mxu0
  %v996 = vpop.f32.mrb[0].mxu0
  %997 = vdwg.mxu0
  %v998 = vadd.f32 %v150, %v993
  %v999 = vxor.u32 %v998, 2147483648
  %v1000 = vmul.f32 %v999, 1.442695
  %v1001 = vpow.pop %v1000
  %v1002 = vadd.f32 %v1001, 1.0
  %v1003 = vrcp.pop %v1002
  %v1004 = vmul.f32 1.0, %v1003
  %v1005 = vtanh.pop %v998
  %v1006 = vmul.f32 %v1004, %v950
  %1008 = vrot.lane.b32.xlu0 %v1005, 64
  %v1009 = vpop.permute.xlu0 %1008
  %v1011 = vmul.f32 %v1004, %v1009
  %1013 = vrot.lane.b32.xlu0 %v1011, 32
  %v1014 = vpop.permute.xlu0 %1013
  %v1016 = vadd.f32 %v1006, %v1014
  %v1017 = vtanh.pop %v1016
  %1019 = vrot.lane.b32.xlu0 %v1017, 64
  %v1020 = vpop.permute.xlu0 %1019
  %v1022 = vmul.f32 %v1004, %v1020
  %v1023 = vpack.c.bf16 %v1022, %v1022
  %1025 = vrot.lane.b32.xlu0 %v1023, 32
  %v1026 = vpop.permute.xlu0 %1025
  %v1028 = vsel %vm194, %v1026, 0
  %1030 = vmatprep.subr.bf16.mxu0 %v313
  %1031 = vmatpush1.bf16.msra.mxu0 %v312
  %1032 = vmatprep.subr.bf16.mxu0 %v317
  %1033 = vmatpush1.bf16.msra.mxu0 %v316
  %1034 = vmatprep.subr.bf16.mxu0 0
  %1035 = vmatpush1.bf16.msra.mxu0 0
  %1036 = vmatprep.subr.bf16.mxu0 0
  %1037 = vmatpush1.bf16.msra.mxu0 0
  %1038 = vmatprep.subr.bf16.mxu0 0
  %1039 = vmatpush1.bf16.msra.mxu0 0
  %1040 = vmatprep.subr.bf16.mxu0 0
  %1041 = vmatpush1.bf16.msra.mxu0 0
  %1042 = vmatprep.subr.bf16.mxu0 0
  %1043 = vmatpush1.bf16.msra.mxu0 0
  %1044 = vmatprep.subr.bf16.mxu0 0
  %1045 = vmatpush1.bf16.msra.mxu0 0
  %1046 = vmatprep.subr.bf16.mxu0 0
  %1047 = vmatpush1.bf16.msra.mxu0 0
  %1048 = vmatprep.subr.bf16.mxu0 0
  %1049 = vmatpush1.bf16.msra.mxu0 0
  %1050 = vmatprep.subr.bf16.mxu0 0
  %1051 = vmatpush1.bf16.msra.mxu0 0
  %1052 = vmatprep.subr.bf16.mxu0 0
  %1053 = vmatpush1.bf16.msra.mxu0 0
  %1054 = vmatprep.subr.bf16.mxu0 0
  %1055 = vmatpush1.bf16.msra.mxu0 0
  %1056 = vmatprep.subr.bf16.mxu0 0
  %1057 = vmatpush1.bf16.msra.mxu0 0
  %1058 = vmatprep.subr.bf16.mxu0 0
  %1059 = vmatpush1.bf16.msra.mxu0 0
  %1060 = vmatprep.subr.bf16.mxu0 0
  %1061 = vmatpush1.bf16.msra.mxu0 0
  %1062 = vmatprep.mubr.bf16.mxu0 0
  %1063 = vmatmul.mubr.bf16.gmra.mrb[0].mxu0 %v1028
  %v1064 = vpop.f32.mrb[0].mxu0
  %v1065 = vadd.f32 %v268, %v1064
  %v1066 = vpop.f32.mrb[0].mxu0
  %v1067 = vadd.f32 %v272, %v1066
  %v1068 = vpop.f32.mrb[0].mxu0
  %v1069 = vpop.f32.mrb[0].mxu0
  %1070 = vdwg.mxu0
  %1071 = vmatprep.subr.bf16.mxu0 %v315
  %1072 = vmatpush1.bf16.msra.mxu0 %v314
  %1073 = vmatprep.subr.bf16.mxu0 %v319
  %1074 = vmatpush1.bf16.msra.mxu0 %v318
  %1075 = vmatprep.subr.bf16.mxu0 0
  %1076 = vmatpush1.bf16.msra.mxu0 0
  %1077 = vmatprep.subr.bf16.mxu0 0
  %1078 = vmatpush1.bf16.msra.mxu0 0
  %1079 = vmatprep.subr.bf16.mxu0 0
  %1080 = vmatpush1.bf16.msra.mxu0 0
  %1081 = vmatprep.subr.bf16.mxu0 0
  %1082 = vmatpush1.bf16.msra.mxu0 0
  %1083 = vmatprep.subr.bf16.mxu0 0
  %1084 = vmatpush1.bf16.msra.mxu0 0
  %1085 = vmatprep.subr.bf16.mxu0 0
  %1086 = vmatpush1.bf16.msra.mxu0 0
  %1087 = vmatprep.subr.bf16.mxu0 0
  %1088 = vmatpush1.bf16.msra.mxu0 0
  %1089 = vmatprep.subr.bf16.mxu0 0
  %1090 = vmatpush1.bf16.msra.mxu0 0
  %1091 = vmatprep.subr.bf16.mxu0 0
  %1092 = vmatpush1.bf16.msra.mxu0 0
  %1093 = vmatprep.subr.bf16.mxu0 0
  %1094 = vmatpush1.bf16.msra.mxu0 0
  %1095 = vmatprep.subr.bf16.mxu0 0
  %1096 = vmatpush1.bf16.msra.mxu0 0
  %1097 = vmatprep.subr.bf16.mxu0 0
  %1098 = vmatpush1.bf16.msra.mxu0 0
  %1099 = vmatprep.subr.bf16.mxu0 0
  %1100 = vmatpush1.bf16.msra.mxu0 0
  %1101 = vmatprep.subr.bf16.mxu0 0
  %1102 = vmatpush1.bf16.msra.mxu0 0
  %1103 = vmatprep.mubr.bf16.mxu0 0
  %1104 = vmatmul.mubr.bf16.gmra.mrb[0].mxu0 %v1028
  %v1105 = vpop.f32.mrb[0].mxu0
  %v1106 = vadd.f32 %v276, %v1105
  %v1107 = vpop.f32.mrb[0].mxu0
  %v1108 = vadd.f32 %v280, %v1107
  %v1109 = vpop.f32.mrb[0].mxu0
  %v1110 = vpop.f32.mrb[0].mxu0
  %1111 = vdwg.mxu0
  %s1112 = scalar_lea.vmem %s7, 128
  %1113 = vst [vmem:[%s1112] sm:$0xff] %v1065
  %1114 = vst [vmem:[%s1112 + $0x8] sm:$0xff] %v1067
  %1115 = vst [vmem:[%s1112 + $0x10] sm:$0xff] %v1106
  %1116 = vst [vmem:[%s1112 + $0x18] sm:$0xff] %v1108
  %1118 = vrot.lane.b32.xlu0 %v180, 96
  %v1119 = vpop.permute.xlu0 %1118
  %v1121 = vmul.f32 %v1022, %v1119
  %1122 = vrot.lane.b32.xlu0 %v180, 32
  %v1123 = vpop.permute.xlu0 %1122
  %v1125 = vmul.f32 %v1016, %v1123
  %v1126 = vpack.c.bf16 %v1121, %v1121
  %1128 = vrot.lane.b32.xlu0 %v1126, 32
  %v1129 = vpop.permute.xlu0 %1128
  %v1131 = vsel %vm194, %v1129, 0
  %1133 = vmatprep.subr.bf16.mxu0 0
  %1134 = vmatpush1.bf16.msra.mxu0 %v190
  %1135 = vmatprep.subr.bf16.mxu0 0
  %1136 = vmatpush1.bf16.msra.mxu0 %v191
  %1137 = vmatprep.subr.bf16.mxu0 0
  %1138 = vmatpush1.bf16.msra.mxu0 0
  %1139 = vmatprep.subr.bf16.mxu0 0
  %1140 = vmatpush1.bf16.msra.mxu0 0
  %1141 = vmatprep.subr.bf16.mxu0 0
  %1142 = vmatpush1.bf16.msra.mxu0 0
  %1143 = vmatprep.subr.bf16.mxu0 0
  %1144 = vmatpush1.bf16.msra.mxu0 0
  %1145 = vmatprep.subr.bf16.mxu0 0
  %1146 = vmatpush1.bf16.msra.mxu0 0
  %1147 = vmatprep.subr.bf16.mxu0 0
  %1148 = vmatpush1.bf16.msra.mxu0 0
  %1149 = vmatprep.subr.bf16.mxu0 0
  %1150 = vmatpush1.bf16.msra.mxu0 0
  %1151 = vmatprep.subr.bf16.mxu0 0
  %1152 = vmatpush1.bf16.msra.mxu0 0
  %1153 = vmatprep.subr.bf16.mxu0 0
  %1154 = vmatpush1.bf16.msra.mxu0 0
  %1155 = vmatprep.subr.bf16.mxu0 0
  %1156 = vmatpush1.bf16.msra.mxu0 0
  %1157 = vmatprep.subr.bf16.mxu0 0
  %1158 = vmatpush1.bf16.msra.mxu0 0
  %1159 = vmatprep.subr.bf16.mxu0 0
  %1160 = vmatpush1.bf16.msra.mxu0 0
  %1161 = vmatprep.subr.bf16.mxu0 0
  %1162 = vmatpush1.bf16.msra.mxu0 0
  %1163 = vmatprep.subr.bf16.mxu0 0
  %1164 = vmatpush1.bf16.msra.mxu0 0
  %1165 = vmatprep.mubr.bf16.mxu0 0
  %1166 = vmatmul.mubr.bf16.gmra.mrb[0].mxu0 %v1131
  %v1167 = vpop.f32.mrb[0].mxu0
  %v1168 = vadd.f32 0.0, %v1167
  %v1169 = vpop.f32.mrb[0].mxu0
  %v1170 = vpop.f32.mrb[0].mxu0
  %v1171 = vpop.f32.mrb[0].mxu0
  %1172 = vdwg.mxu0
  %v1173 = vadd.f32 %v153, %v1168
  %v1174 = vxor.u32 %v1173, 2147483648
  %v1175 = vmul.f32 %v1174, 1.442695
  %v1176 = vpow.pop %v1175
  %v1177 = vadd.f32 %v1176, 1.0
  %v1178 = vrcp.pop %v1177
  %v1179 = vmul.f32 1.0, %v1178
  %v1180 = vtanh.pop %v1173
  %v1181 = vmul.f32 %v1179, %v1125
  %1183 = vrot.lane.b32.xlu0 %v1180, 64
  %v1184 = vpop.permute.xlu0 %1183
  %v1186 = vmul.f32 %v1179, %v1184
  %1188 = vrot.lane.b32.xlu0 %v1186, 32
  %v1189 = vpop.permute.xlu0 %1188
  %v1191 = vadd.f32 %v1181, %v1189
  %v1192 = vtanh.pop %v1191
  %1194 = vrot.lane.b32.xlu0 %v1192, 64
  %v1195 = vpop.permute.xlu0 %1194
  %v1197 = vmul.f32 %v1179, %v1195
  %v1198 = vpack.c.bf16 %v1197, %v1197
  %1200 = vrot.lane.b32.xlu0 %v1198, 32
  %v1201 = vpop.permute.xlu0 %1200
  %v1203 = vsel %vm194, %v1201, 0
  %1205 = vmatprep.subr.bf16.mxu0 %v313
  %1206 = vmatpush1.bf16.msra.mxu0 %v312
  %1207 = vmatprep.subr.bf16.mxu0 %v317
  %1208 = vmatpush1.bf16.msra.mxu0 %v316
  %1209 = vmatprep.subr.bf16.mxu0 0
  %1210 = vmatpush1.bf16.msra.mxu0 0
  %1211 = vmatprep.subr.bf16.mxu0 0
  %1212 = vmatpush1.bf16.msra.mxu0 0
  %1213 = vmatprep.subr.bf16.mxu0 0
  %1214 = vmatpush1.bf16.msra.mxu0 0
  %1215 = vmatprep.subr.bf16.mxu0 0
  %1216 = vmatpush1.bf16.msra.mxu0 0
  %1217 = vmatprep.subr.bf16.mxu0 0
  %1218 = vmatpush1.bf16.msra.mxu0 0
  %1219 = vmatprep.subr.bf16.mxu0 0
  %1220 = vmatpush1.bf16.msra.mxu0 0
  %1221 = vmatprep.subr.bf16.mxu0 0
  %1222 = vmatpush1.bf16.msra.mxu0 0
  %1223 = vmatprep.subr.bf16.mxu0 0
  %1224 = vmatpush1.bf16.msra.mxu0 0
  %1225 = vmatprep.subr.bf16.mxu0 0
  %1226 = vmatpush1.bf16.msra.mxu0 0
  %1227 = vmatprep.subr.bf16.mxu0 0
  %1228 = vmatpush1.bf16.msra.mxu0 0
  %1229 = vmatprep.subr.bf16.mxu0 0
  %1230 = vmatpush1.bf16.msra.mxu0 0
  %1231 = vmatprep.subr.bf16.mxu0 0
  %1232 = vmatpush1.bf16.msra.mxu0 0
  %1233 = vmatprep.subr.bf16.mxu0 0
  %1234 = vmatpush1.bf16.msra.mxu0 0
  %1235 = vmatprep.subr.bf16.mxu0 0
  %1236 = vmatpush1.bf16.msra.mxu0 0
  %1237 = vmatprep.mubr.bf16.mxu0 0
  %1238 = vmatmul.mubr.bf16.gmra.mrb[0].mxu0 %v1203
  %v1239 = vpop.f32.mrb[0].mxu0
  %v1240 = vadd.f32 %v268, %v1239
  %v1241 = vpop.f32.mrb[0].mxu0
  %v1242 = vadd.f32 %v272, %v1241
  %v1243 = vpop.f32.mrb[0].mxu0
  %v1244 = vpop.f32.mrb[0].mxu0
  %1245 = vdwg.mxu0
  %1246 = vmatprep.subr.bf16.mxu0 %v315
  %1247 = vmatpush1.bf16.msra.mxu0 %v314
  %1248 = vmatprep.subr.bf16.mxu0 %v319
  %1249 = vmatpush1.bf16.msra.mxu0 %v318
  %1250 = vmatprep.subr.bf16.mxu0 0
  %1251 = vmatpush1.bf16.msra.mxu0 0
  %1252 = vmatprep.subr.bf16.mxu0 0
  %1253 = vmatpush1.bf16.msra.mxu0 0
  %1254 = vmatprep.subr.bf16.mxu0 0
  %1255 = vmatpush1.bf16.msra.mxu0 0
  %1256 = vmatprep.subr.bf16.mxu0 0
  %1257 = vmatpush1.bf16.msra.mxu0 0
  %1258 = vmatprep.subr.bf16.mxu0 0
  %1259 = vmatpush1.bf16.msra.mxu0 0
  %1260 = vmatprep.subr.bf16.mxu0 0
  %1261 = vmatpush1.bf16.msra.mxu0 0
  %1262 = vmatprep.subr.bf16.mxu0 0
  %1263 = vmatpush1.bf16.msra.mxu0 0
  %1264 = vmatprep.subr.bf16.mxu0 0
  %1265 = vmatpush1.bf16.msra.mxu0 0
  %1266 = vmatprep.subr.bf16.mxu0 0
  %1267 = vmatpush1.bf16.msra.mxu0 0
  %1268 = vmatprep.subr.bf16.mxu0 0
  %1269 = vmatpush1.bf16.msra.mxu0 0
  %1270 = vmatprep.subr.bf16.mxu0 0
  %1271 = vmatpush1.bf16.msra.mxu0 0
  %1272 = vmatprep.subr.bf16.mxu0 0
  %1273 = vmatpush1.bf16.msra.mxu0 0
  %1274 = vmatprep.subr.bf16.mxu0 0
  %1275 = vmatpush1.bf16.msra.mxu0 0
  %1276 = vmatprep.subr.bf16.mxu0 0
  %1277 = vmatpush1.bf16.msra.mxu0 0
  %1278 = vmatprep.mubr.bf16.mxu0 0
  %1279 = vmatmul.mubr.bf16.gmra.mrb[0].mxu0 %v1203
  %v1280 = vpop.f32.mrb[0].mxu0
  %v1281 = vadd.f32 %v276, %v1280
  %v1282 = vpop.f32.mrb[0].mxu0
  %v1283 = vadd.f32 %v280, %v1282
  %v1284 = vpop.f32.mrb[0].mxu0
  %v1285 = vpop.f32.mrb[0].mxu0
  %1286 = vdwg.mxu0
  %s1287 = scalar_lea.vmem %s7, 160
  %1288 = vst [vmem:[%s1287] sm:$0xff] %v1240
  %1289 = vst [vmem:[%s1287 + $0x8] sm:$0xff] %v1242
  %1290 = vst [vmem:[%s1287 + $0x10] sm:$0xff] %v1281
  %1291 = vst [vmem:[%s1287 + $0x18] sm:$0xff] %v1283
  %1293 = vrot.lane.b32.xlu0 %v181, 96
  %v1294 = vpop.permute.xlu0 %1293
  %v1296 = vmul.f32 %v1197, %v1294
  %1297 = vrot.lane.b32.xlu0 %v181, 32
  %v1298 = vpop.permute.xlu0 %1297
  %v1300 = vmul.f32 %v1191, %v1298
  %v1301 = vpack.c.bf16 %v1296, %v1296
  %1303 = vrot.lane.b32.xlu0 %v1301, 32
  %v1304 = vpop.permute.xlu0 %1303
  %v1306 = vsel %vm194, %v1304, 0
  %1308 = vmatprep.subr.bf16.mxu0 0
  %1309 = vmatpush1.bf16.msra.mxu0 %v190
  %1310 = vmatprep.subr.bf16.mxu0 0
  %1311 = vmatpush1.bf16.msra.mxu0 %v191
  %1312 = vmatprep.subr.bf16.mxu0 0
  %1313 = vmatpush1.bf16.msra.mxu0 0
  %1314 = vmatprep.subr.bf16.mxu0 0
  %1315 = vmatpush1.bf16.msra.mxu0 0
  %1316 = vmatprep.subr.bf16.mxu0 0
  %1317 = vmatpush1.bf16.msra.mxu0 0
  %1318 = vmatprep.subr.bf16.mxu0 0
  %1319 = vmatpush1.bf16.msra.mxu0 0
  %1320 = vmatprep.subr.bf16.mxu0 0
  %1321 = vmatpush1.bf16.msra.mxu0 0
  %1322 = vmatprep.subr.bf16.mxu0 0
  %1323 = vmatpush1.bf16.msra.mxu0 0
  %1324 = vmatprep.subr.bf16.mxu0 0
  %1325 = vmatpush1.bf16.msra.mxu0 0
  %1326 = vmatprep.subr.bf16.mxu0 0
  %1327 = vmatpush1.bf16.msra.mxu0 0
  %1328 = vmatprep.subr.bf16.mxu0 0
  %1329 = vmatpush1.bf16.msra.mxu0 0
  %1330 = vmatprep.subr.bf16.mxu0 0
  %1331 = vmatpush1.bf16.msra.mxu0 0
  %1332 = vmatprep.subr.bf16.mxu0 0
  %1333 = vmatpush1.bf16.msra.mxu0 0
  %1334 = vmatprep.subr.bf16.mxu0 0
  %1335 = vmatpush1.bf16.msra.mxu0 0
  %1336 = vmatprep.subr.bf16.mxu0 0
  %1337 = vmatpush1.bf16.msra.mxu0 0
  %1338 = vmatprep.subr.bf16.mxu0 0
  %1339 = vmatpush1.bf16.msra.mxu0 0
  %1340 = vmatprep.mubr.bf16.mxu0 0
  %1341 = vmatmul.mubr.bf16.gmra.mrb[0].mxu0 %v1306
  %v1342 = vpop.f32.mrb[0].mxu0
  %v1343 = vadd.f32 0.0, %v1342
  %v1344 = vpop.f32.mrb[0].mxu0
  %v1345 = vpop.f32.mrb[0].mxu0
  %v1346 = vpop.f32.mrb[0].mxu0
  %1347 = vdwg.mxu0
  %v1348 = vadd.f32 %v158, %v1343
  %v1349 = vxor.u32 %v1348, 2147483648
  %v1350 = vmul.f32 %v1349, 1.442695
  %v1351 = vpow.pop %v1350
  %v1352 = vadd.f32 %v1351, 1.0
  %v1353 = vrcp.pop %v1352
  %v1354 = vmul.f32 1.0, %v1353
  %v1355 = vtanh.pop %v1348
  %v1356 = vmul.f32 %v1354, %v1300
  %1358 = vrot.lane.b32.xlu0 %v1355, 64
  %v1359 = vpop.permute.xlu0 %1358
  %v1361 = vmul.f32 %v1354, %v1359
  %1363 = vrot.lane.b32.xlu0 %v1361, 32
  %v1364 = vpop.permute.xlu0 %1363
  %v1366 = vadd.f32 %v1356, %v1364
  %v1367 = vtanh.pop %v1366
  %1369 = vrot.lane.b32.xlu0 %v1367, 64
  %v1370 = vpop.permute.xlu0 %1369
  %v1372 = vmul.f32 %v1354, %v1370
  %v1373 = vpack.c.bf16 %v1372, %v1372
  %1375 = vrot.lane.b32.xlu0 %v1373, 32
  %v1376 = vpop.permute.xlu0 %1375
  %v1378 = vsel %vm194, %v1376, 0
  %1380 = vmatprep.subr.bf16.mxu0 %v313
  %1381 = vmatpush1.bf16.msra.mxu0 %v312
  %1382 = vmatprep.subr.bf16.mxu0 %v317
  %1383 = vmatpush1.bf16.msra.mxu0 %v316
  %1384 = vmatprep.subr.bf16.mxu0 0
  %1385 = vmatpush1.bf16.msra.mxu0 0
  %1386 = vmatprep.subr.bf16.mxu0 0
  %1387 = vmatpush1.bf16.msra.mxu0 0
  %1388 = vmatprep.subr.bf16.mxu0 0
  %1389 = vmatpush1.bf16.msra.mxu0 0
  %1390 = vmatprep.subr.bf16.mxu0 0
  %1391 = vmatpush1.bf16.msra.mxu0 0
  %1392 = vmatprep.subr.bf16.mxu0 0
  %1393 = vmatpush1.bf16.msra.mxu0 0
  %1394 = vmatprep.subr.bf16.mxu0 0
  %1395 = vmatpush1.bf16.msra.mxu0 0
  %1396 = vmatprep.subr.bf16.mxu0 0
  %1397 = vmatpush1.bf16.msra.mxu0 0
  %1398 = vmatprep.subr.bf16.mxu0 0
  %1399 = vmatpush1.bf16.msra.mxu0 0
  %1400 = vmatprep.subr.bf16.mxu0 0
  %1401 = vmatpush1.bf16.msra.mxu0 0
  %1402 = vmatprep.subr.bf16.mxu0 0
  %1403 = vmatpush1.bf16.msra.mxu0 0
  %1404 = vmatprep.subr.bf16.mxu0 0
  %1405 = vmatpush1.bf16.msra.mxu0 0
  %1406 = vmatprep.subr.bf16.mxu0 0
  %1407 = vmatpush1.bf16.msra.mxu0 0
  %1408 = vmatprep.subr.bf16.mxu0 0
  %1409 = vmatpush1.bf16.msra.mxu0 0
  %1410 = vmatprep.subr.bf16.mxu0 0
  %1411 = vmatpush1.bf16.msra.mxu0 0
  %1412 = vmatprep.mubr.bf16.mxu0 0
  %1413 = vmatmul.mubr.bf16.gmra.mrb[0].mxu0 %v1378
  %v1414 = vpop.f32.mrb[0].mxu0
  %v1415 = vadd.f32 %v268, %v1414
  %v1416 = vpop.f32.mrb[0].mxu0
  %v1417 = vadd.f32 %v272, %v1416
  %v1418 = vpop.f32.mrb[0].mxu0
  %v1419 = vpop.f32.mrb[0].mxu0
  %1420 = vdwg.mxu0
  %1421 = vmatprep.subr.bf16.mxu0 %v315
  %1422 = vmatpush1.bf16.msra.mxu0 %v314
  %1423 = vmatprep.subr.bf16.mxu0 %v319
  %1424 = vmatpush1.bf16.msra.mxu0 %v318
  %1425 = vmatprep.subr.bf16.mxu0 0
  %1426 = vmatpush1.bf16.msra.mxu0 0
  %1427 = vmatprep.subr.bf16.mxu0 0
  %1428 = vmatpush1.bf16.msra.mxu0 0
  %1429 = vmatprep.subr.bf16.mxu0 0
  %1430 = vmatpush1.bf16.msra.mxu0 0
  %1431 = vmatprep.subr.bf16.mxu0 0
  %1432 = vmatpush1.bf16.msra.mxu0 0
  %1433 = vmatprep.subr.bf16.mxu0 0
  %1434 = vmatpush1.bf16.msra.mxu0 0
  %1435 = vmatprep.subr.bf16.mxu0 0
  %1436 = vmatpush1.bf16.msra.mxu0 0
  %1437 = vmatprep.subr.bf16.mxu0 0
  %1438 = vmatpush1.bf16.msra.mxu0 0
  %1439 = vmatprep.subr.bf16.mxu0 0
  %1440 = vmatpush1.bf16.msra.mxu0 0
  %1441 = vmatprep.subr.bf16.mxu0 0
  %1442 = vmatpush1.bf16.msra.mxu0 0
  %1443 = vmatprep.subr.bf16.mxu0 0
  %1444 = vmatpush1.bf16.msra.mxu0 0
  %1445 = vmatprep.subr.bf16.mxu0 0
  %1446 = vmatpush1.bf16.msra.mxu0 0
  %1447 = vmatprep.subr.bf16.mxu0 0
  %1448 = vmatpush1.bf16.msra.mxu0 0
  %1449 = vmatprep.subr.bf16.mxu0 0
  %1450 = vmatpush1.bf16.msra.mxu0 0
  %1451 = vmatprep.subr.bf16.mxu0 0
  %1452 = vmatpush1.bf16.msra.mxu0 0
  %1453 = vmatprep.mubr.bf16.mxu0 0
  %1454 = vmatmul.mubr.bf16.gmra.mrb[0].mxu0 %v1378
  %v1455 = vpop.f32.mrb[0].mxu0
  %v1456 = vadd.f32 %v276, %v1455
  %v1457 = vpop.f32.mrb[0].mxu0
  %v1458 = vadd.f32 %v280, %v1457
  %v1459 = vpop.f32.mrb[0].mxu0
  %v1460 = vpop.f32.mrb[0].mxu0
  %1461 = vdwg.mxu0
  %s1462 = scalar_lea.vmem %s7, 192
  %1463 = vst [vmem:[%s1462] sm:$0xff] %v1415
  %1464 = vst [vmem:[%s1462 + $0x8] sm:$0xff] %v1417
  %1465 = vst [vmem:[%s1462 + $0x10] sm:$0xff] %v1456
  %1466 = vst [vmem:[%s1462 + $0x18] sm:$0xff] %v1458
  // Predicated region
  $region30: #{rnn_model_forward.1} parent=0 // pred_check
    _
  $region31: #{rnn_model_forward.1} parent=0 // pred_check_branch
    %1468 = sbr.rel (0) target = $region33
  $region32: #{rnn_model_forward.1} parent=0 // pred_region
    _
  $region33: #{rnn_model_forward.1} parent=0 // pred_fallthru
    _
  // Predicated region
  $region34: #{rnn_model_forward.1} parent=0 // pred_check
    _
  $region35: #{rnn_model_forward.1} parent=0 // pred_check_branch
    %1470 = sbr.rel (0) target = $region37
  $region36: #{rnn_model_forward.1} parent=0 // pred_region
    _
  $region37: #{rnn_model_forward.1} parent=0 // pred_fallthru
    _

</llo_original>
